<compile_context>
chip_gen: v7x
topology: tpu7x:2x2x1
jax: 0.10.0
libtpu: 0.0.40
codegen_flags: <defaults>
</compile_context>

<pallas_src>
import math

import jax
import jax.numpy as jnp
from jax import lax
from jax.experimental import pallas as pl
from jax.experimental.pallas import tpu as pltpu


def _chip_config():
    """(target_M_rows, num_tensorcores) for the local TPU generation.

    v5e: 4x128x128 MXU -> 128-row M tiles, 1 TC.
    v6e: 2x256x256 MXU -> 256-row M tiles, 1 TC.
    v7x: 2x256x256 MXU -> 256-row M tiles, 2 TCs per chip.
    """
    kind = ""
    try:
        kind = jax.devices()[0].device_kind.lower()
    except Exception:  # pragma: no cover - defensive; fall back to defaults
        pass
    target_rows, num_tc = 256, 1
    if ("v5 lite" in kind) or ("v5e" in kind) or ("v5lite" in kind):
        target_rows = 128
    if ("v7" in kind) or ("tpu7" in kind):
        num_tc = 2
    return target_rows, num_tc


def _choose_batch_tile(batch, seq_len, target_rows, num_tc):
    """Pick Bt so Bt*seq_len approaches the MXU-friendly row target.

    Only cap to keep >= num_tc grid steps when the chip actually has multiple
    TensorCores (v7x); on single-TC chips the biggest tile wins.  Bt must
    divide batch.
    """
    bt = max(1, min(batch, target_rows // max(seq_len, 1)))
    if num_tc > 1 and batch >= num_tc:
        bt = max(1, min(bt, batch // num_tc))
    while batch % bt:
        bt -= 1
    return bt


def _vmem_estimate(batch_tile, seq_len, embed_dim, eo):
    """Rough per-call VMEM footprint in bytes (double-buffered pipeline)."""
    x_blk = batch_tile * seq_len * embed_dim * 2            # bf16
    out_blk = batch_tile * seq_len * eo * 4                 # f32
    weights = (embed_dim * 3 * embed_dim * 2 + 3 * embed_dim * 4
               + embed_dim * eo * 2 + eo * 4)                # bf16 W + f32 b
    scratch = batch_tile * seq_len * eo * 4                 # f32 accumulator
    return 2 * (x_blk + out_blk + weights) + scratch


def make_attention_mapper_kernel(batch_tile, seq_len, embed_dim, num_heads, eo):
    head_dim = embed_dim // num_heads
    scale = 1.0 / math.sqrt(head_dim)
    n_rows = batch_tile * seq_len
    E = embed_dim

    def kernel(x_ref, wqkv_ref, bqkv_ref, wf_ref, bf_ref, out_ref, acc_ref):
        # (Bt, S, E) block -> (Bt*S, E) rows for the fused QKV matmul.
        x2 = x_ref[...].reshape(n_rows, E)                    # bf16

        # Fused QKV projection: one (N, E) @ (E, 3E) MXU matmul, f32 accum.
        qkv = jnp.dot(x2, wqkv_ref[...],
                      preferred_element_type=jnp.float32) + bqkv_ref[...]

        # Fused (out_proj . mapping-linear) accumulator starts at its bias.
        acc_ref[...] = jnp.broadcast_to(bf_ref[...], (n_rows, eo))

        # Per-head attention, batched over the batch tile; each head's output
        # is accumulated into the fused projection (no lane concatenation).
        for h in range(num_heads):
            qo = h * head_dim
            ko = E + h * head_dim
            vo = 2 * E + h * head_dim
            qh = qkv[:, qo:qo + head_dim].reshape(batch_tile, seq_len, head_dim)
            kh = qkv[:, ko:ko + head_dim].reshape(batch_tile, seq_len, head_dim)
            vh = qkv[:, vo:vo + head_dim].reshape(batch_tile, seq_len, head_dim)

            # scores[b] = q[b] @ k[b]^T, batched over the batch tile.
            s = lax.dot_general(
                qh.astype(jnp.bfloat16), kh.astype(jnp.bfloat16),
                (((2,), (2,)), ((0,), (0,))),
                preferred_element_type=jnp.float32) * scale    # (Bt, S, S)

            # Numerically-stable f32 softmax; exact reciprocal (not approx).
            m = jnp.max(s, axis=-1, keepdims=True)
            p = jnp.exp(s - m)
            l = jnp.sum(p, axis=-1, keepdims=True)             # (Bt, S, 1)

            o = lax.dot_general(
                p.astype(jnp.bfloat16), vh.astype(jnp.bfloat16),
                (((2,), (1,)), ((0,), (0,))),
                preferred_element_type=jnp.float32)            # (Bt, S, hd)
            o = o * pl.reciprocal(l, approx=False)
            o2 = o.reshape(n_rows, head_dim).astype(jnp.bfloat16)

            # acc += o_h @ W_fused[h]: converts head lane-concat into cheap
            # extra MXU accumulation (wf_ref is laid out (H, hd, EO) so the
            # per-head weight read is a leading-dim index, not a lane slice).
            acc_ref[...] += jnp.dot(o2, wf_ref[h],
                                    preferred_element_type=jnp.float32)

        # Single lane-dense store: last dim = E * output_size (256 here).
        out_ref[...] = acc_ref[...].reshape(
            batch_tile, seq_len, eo).astype(out_ref.dtype)

    return kernel


def attention_mapper(x, params, num_heads, output_size):
    """x: (B, S, E) float32.  Returns (output_size, B, S, E) float32."""
    B, S, E = x.shape
    H = num_heads
    hd = E // H
    EO = E * output_size

    # --- parameter fusion (f32, once, outside the kernel) --------------------
    w_qkv = jnp.concatenate(
        [params["wq_t"], params["wk_t"], params["wv_t"]], axis=1)   # (E, 3E)
    b_qkv = jnp.concatenate(
        [params["bq"], params["bk"], params["bv"]], axis=1)         # (1, 3E)
    w_fused = params["wo_t"] @ params["wl_t"]                       # (E, EO) f32
    b_fused = params["bo"] @ params["wl_t"] + params["bl"]          # (1, EO) f32

    # bf16 matmul operands (f32 accumulation inside the kernel); biases f32.
    x_bf = x.astype(jnp.bfloat16)
    w_qkv_bf = w_qkv.astype(jnp.bfloat16)
    # Per-head layout (H, hd, EO): kernel indexes heads on the leading dim.
    w_fused_bf = w_fused.reshape(H, hd, EO).astype(jnp.bfloat16)

    target_rows, num_tc = _chip_config()
    Bt = _choose_batch_tile(B, S, target_rows, num_tc)
    grid = (B // Bt,)
    kernel = make_attention_mapper_kernel(Bt, S, E, H, EO)

    const = lambda shape: pl.BlockSpec(shape, lambda b: (0,) * len(shape))

    # Explicit VMEM budgeting: only raise the scoped limit when needed.
    # For very large E*output_size, additionally single-buffer the
    # grid-invariant weight specs (pipeline_mode=pl.Buffered(1)) and/or tile
    # the EO dimension with a second grid axis.
    vmem_needed = _vmem_estimate(Bt, S, E, EO)
    cparams = dict(dimension_semantics=("parallel",))
    if vmem_needed > 32 * 1024 * 1024:
        cparams["vmem_limit_bytes"] = min(int(vmem_needed * 1.25),
                                          100 * 1024 * 1024)

    out = pl.pallas_call(
        kernel,
        out_shape=jax.ShapeDtypeStruct((B, S, EO), jnp.float32),
        grid_spec=pltpu.PrefetchScalarGridSpec(
            num_scalar_prefetch=0,
            grid=grid,
            in_specs=[
                pl.BlockSpec((Bt, S, E), lambda b: (b, 0, 0)),  # x block
                const((E, 3 * E)),      # fused QKV weight (bf16)
                const((1, 3 * E)),      # fused QKV bias   (f32)
                const((H, hd, EO)),     # fused Wo.Wl weight, per-head (bf16)
                const((1, EO)),         # fused bias       (f32)
            ],
            out_specs=pl.BlockSpec((Bt, S, EO), lambda b: (b, 0, 0)),
            scratch_shapes=[pltpu.VMEM((Bt * S, EO), jnp.float32)],
        ),
        compiler_params=pltpu.CompilerParams(**cparams),
    )(x_bf, w_qkv_bf, b_qkv, w_fused_bf, b_fused)

    # mapped.view(B, S, output_size, -1).permute(2, 0, 1, 3) -> (O, B, S, E)
    mapped = out.reshape(B, S, output_size, E)
    return jnp.transpose(mapped, (2, 0, 1, 3))


def reference_attention_mapper(x, params, num_heads, output_size):
    """Pure-JAX f32 reference matching PyTorch nn.MultiheadAttention semantics."""
    B, S, E = x.shape
    hd = E // num_heads
    q = x @ params["wq_t"] + params["bq"]
    k = x @ params["wk_t"] + params["bk"]
    v = x @ params["wv_t"] + params["bv"]

    def split(t):  # (B, S, E) -> (B, H, S, hd)
        return t.reshape(B, S, num_heads, hd).transpose(0, 2, 1, 3)

    qh, kh, vh = split(q), split(k), split(v)
    s = jnp.einsum("bhqd,bhkd->bhqk", qh, kh) / math.sqrt(hd)
    p = jax.nn.softmax(s, axis=-1)
    o = jnp.einsum("bhqk,bhkd->bhqd", p, vh)
    o = o.transpose(0, 2, 1, 3).reshape(B, S, E)
    proj = o @ params["wo_t"] + params["bo"]
    mapped = proj @ params["wl_t"] + params["bl"]
    mapped = mapped.reshape(B, S, output_size, E)
    return jnp.transpose(mapped, (2, 0, 1, 3))


def init_params(key, embed_dim, output_size):
    E, O = embed_dim, output_size
    keys = jax.random.split(key, 11)
    bound = 1.0 / math.sqrt(E)

    def u(k, shape, b):
        return jax.random.uniform(k, shape, jnp.float32, -b, b)

    return {
        # QKV (stored pre-transposed: (E_in, E_out))
        "wq_t": u(keys[0], (E, E), bound),
        "wk_t": u(keys[1], (E, E), bound),
        "wv_t": u(keys[2], (E, E), bound),
        "bq": u(keys[3], (1, E), bound),
        "bk": u(keys[4], (1, E), bound),
        "bv": u(keys[5], (1, E), bound),
        # MHA output projection
        "wo_t": u(keys[6], (E, E), bound),
        "bo": u(keys[7], (1, E), bound),
        # mapping linear: E -> E * output_size
        "wl_t": u(keys[8], (E, E * O), bound),
        "bl": u(keys[9], (1, E * O), bound),
    }


if __name__ == "__main__":
    B, S, E = 2, 8, 32
    num_heads = 4
    output_size = 8

    key = jax.random.PRNGKey(0)
    k_x, k_p = jax.random.split(key)
    x = jax.random.normal(k_x, (B, S, E), jnp.float32)
    params = init_params(k_p, E, output_size)

    out = attention_mapper(x, params, num_heads, output_size)
    out = jax.block_until_ready(out)

    ref = reference_attention_mapper(x, params, num_heads, output_size)
    assert out.shape == (output_size, B, S, E), out.shape
    # bf16 matmul operands (f32 accumulation) vs the f32 reference.
    assert jnp.allclose(out, ref, atol=2e-2, rtol=2e-2), \
        float(jnp.max(jnp.abs(out - ref)))

    print("KERNEL_OK")
</pallas_src>

<mosaic_0001>
module attributes {stable_mosaic.version = 11 : i64} {
  func.func @kernel(%arg0: i32, %arg1: memref<2x8x32xbf16, #tpu.memory_space<vmem>>, %arg2: memref<32x96xbf16, #tpu.memory_space<vmem>>, %arg3: memref<1x96xf32, #tpu.memory_space<vmem>>, %arg4: memref<4x8x256xbf16, #tpu.memory_space<vmem>>, %arg5: memref<1x256xf32, #tpu.memory_space<vmem>>, %arg6: memref<2x8x256xf32, #tpu.memory_space<vmem>>, %arg7: memref<16x256xf32, #tpu.memory_space<vmem>>) attributes {dimension_semantics = [#tpu.dimension_semantics<parallel>], iteration_bounds = array<i64: 1>, scalar_prefetch = 0 : i64, scratch_operands = 1 : i64, tpu.core_type = #tpu.core_type<tc>, window_params = [{transform_indices = @transform_0, window_bounds = array<i64: 2, 8, 32>}, {pipeline_mode = #tpu.pipeline_mode<synchronous>, transform_indices = @transform_1, window_bounds = array<i64: 32, 96>}, {pipeline_mode = #tpu.pipeline_mode<synchronous>, transform_indices = @transform_2, window_bounds = array<i64: 1, 96>}, {pipeline_mode = #tpu.pipeline_mode<synchronous>, transform_indices = @transform_3, window_bounds = array<i64: 4, 8, 256>}, {pipeline_mode = #tpu.pipeline_mode<synchronous>, transform_indices = @transform_4, window_bounds = array<i64: 1, 256>}, {transform_indices = @transform_5, window_bounds = array<i64: 2, 8, 256>}]} {
    %c0 = arith.constant 0 : index
    %c0_0 = arith.constant 0 : index
    %c0_1 = arith.constant 0 : index
    %0 = vector.load %arg1[%c0, %c0_0, %c0_1] : memref<2x8x32xbf16, #tpu.memory_space<vmem>>, vector<2x8x32xbf16>
    %1 = vector.shape_cast %0 : vector<2x8x32xbf16> to vector<16x32xbf16>
    %c0_2 = arith.constant 0 : index
    %c0_3 = arith.constant 0 : index
    %2 = vector.load %arg2[%c0_2, %c0_3] : memref<32x96xbf16, #tpu.memory_space<vmem>>, vector<32x96xbf16>
    %cst = arith.constant dense<0.000000e+00> : vector<16x96xf32>
    %3 = tpu.matmul %1, %2, %cst {dimension_numbers = #tpu.dot_dimension_numbers<[1], [0], [0], [1], [0, 0, 1, 1], [], []>} : vector<16x32xbf16>, vector<32x96xbf16>, vector<16x96xf32> -> vector<16x96xf32>
    %c0_4 = arith.constant 0 : index
    %c0_5 = arith.constant 0 : index
    %4 = vector.load %arg3[%c0_4, %c0_5] : memref<1x96xf32, #tpu.memory_space<vmem>>, vector<1x96xf32>
    %5 = vector.broadcast %4 : vector<1x96xf32> to vector<16x96xf32>
    %6 = arith.addf %3, %5 : vector<16x96xf32>
    %c0_6 = arith.constant 0 : index
    %c0_7 = arith.constant 0 : index
    %7 = vector.load %arg5[%c0_6, %c0_7] : memref<1x256xf32, #tpu.memory_space<vmem>>, vector<1x256xf32>
    %8 = vector.shape_cast %7 : vector<1x256xf32> to vector<1x256xf32>
    %9 = vector.broadcast %8 : vector<1x256xf32> to vector<16x256xf32>
    %c0_8 = arith.constant 0 : index
    %c0_9 = arith.constant 0 : index
    %10 = vector.load %arg7[%c0_8, %c0_9] : memref<16x256xf32, #tpu.memory_space<vmem>>, vector<16x256xf32>
    tpu.vector_store %arg7[%c0_8, %c0_9], %9 {strides = array<i32>} : memref<16x256xf32, #tpu.memory_space<vmem>>, vector<16x256xf32>,
    %11 = vector.extract_strided_slice %6 {offsets = [0, 0], sizes = [16, 8], strides = [1, 1]} : vector<16x96xf32> to vector<16x8xf32>
    %12 = vector.shape_cast %11 : vector<16x8xf32> to vector<2x8x8xf32>
    %13 = vector.extract_strided_slice %6 {offsets = [0, 32], sizes = [16, 8], strides = [1, 1]} : vector<16x96xf32> to vector<16x8xf32>
    %14 = vector.shape_cast %13 : vector<16x8xf32> to vector<2x8x8xf32>
    %15 = vector.extract_strided_slice %6 {offsets = [0, 64], sizes = [16, 8], strides = [1, 1]} : vector<16x96xf32> to vector<16x8xf32>
    %16 = vector.shape_cast %15 : vector<16x8xf32> to vector<2x8x8xf32>
    %17 = arith.truncf %12 : vector<2x8x8xf32> to vector<2x8x8xbf16>
    %18 = arith.truncf %14 : vector<2x8x8xf32> to vector<2x8x8xbf16>
    %cst_10 = arith.constant dense<0.000000e+00> : vector<2x8x8xf32>
    %19 = tpu.matmul %17, %18, %cst_10 {dimension_numbers = #tpu.dot_dimension_numbers<[2], [2], [1], [1], [0, 0, 0, 1, 1, 1], [0], [0]>} : vector<2x8x8xbf16>, vector<2x8x8xbf16>, vector<2x8x8xf32> -> vector<2x8x8xf32>
    %cst_11 = arith.constant 0.353553385 : f32
    %20 = vector.broadcast %cst_11 : f32 to vector<2x8x8xf32>
    %21 = arith.mulf %19, %20 : vector<2x8x8xf32>
    %cst_12 = arith.constant dense<0xFF800000> : vector<2x8xf32>
    %22 = vector.multi_reduction <maximumf>, %21, %cst_12 [2] : vector<2x8x8xf32> to vector<2x8xf32>
    %23 = vector.shape_cast %22 : vector<2x8xf32> to vector<2x8x1xf32>
    %24 = vector.broadcast %23 : vector<2x8x1xf32> to vector<2x8x8xf32>
    %25 = arith.subf %21, %24 : vector<2x8x8xf32>
    %26 = math.exp %25 : vector<2x8x8xf32>
    %cst_13 = arith.constant dense<0.000000e+00> : vector<2x8xf32>
    %27 = vector.multi_reduction <add>, %26, %cst_13 [2] : vector<2x8x8xf32> to vector<2x8xf32>
    %28 = vector.shape_cast %27 : vector<2x8xf32> to vector<2x8x1xf32>
    %29 = arith.truncf %26 : vector<2x8x8xf32> to vector<2x8x8xbf16>
    %30 = arith.truncf %16 : vector<2x8x8xf32> to vector<2x8x8xbf16>
    %cst_14 = arith.constant dense<0.000000e+00> : vector<2x8x8xf32>
    %31 = tpu.matmul %29, %30, %cst_14 {dimension_numbers = #tpu.dot_dimension_numbers<[2], [1], [1], [2], [0, 0, 0, 1, 1, 2], [0], [0]>} : vector<2x8x8xbf16>, vector<2x8x8xbf16>, vector<2x8x8xf32> -> vector<2x8x8xf32>
    %32 = tpu.reciprocal %28 : vector<2x8x1xf32> -> vector<2x8x1xf32>
    %33 = vector.broadcast %32 : vector<2x8x1xf32> to vector<2x8x8xf32>
    %34 = arith.mulf %31, %33 : vector<2x8x8xf32>
    %35 = vector.shape_cast %34 : vector<2x8x8xf32> to vector<16x8xf32>
    %36 = arith.truncf %35 : vector<16x8xf32> to vector<16x8xbf16>
    %c0_15 = arith.constant 0 : index
    %c0_16 = arith.constant 0 : index
    %37 = vector.load %arg7[%c0_15, %c0_16] : memref<16x256xf32, #tpu.memory_space<vmem>>, vector<16x256xf32>
    %c0_17 = arith.constant 0 : index
    %c0_18 = arith.constant 0 : index
    %c0_19 = arith.constant 0 : index
    %38 = vector.load %arg4[%c0_17, %c0_18, %c0_19] : memref<4x8x256xbf16, #tpu.memory_space<vmem>>, vector<1x8x256xbf16>
    %39 = vector.shape_cast %38 : vector<1x8x256xbf16> to vector<8x256xbf16>
    %cst_20 = arith.constant dense<0.000000e+00> : vector<16x256xf32>
    %40 = tpu.matmul %36, %39, %cst_20 {dimension_numbers = #tpu.dot_dimension_numbers<[1], [0], [0], [1], [0, 0, 1, 1], [], []>} : vector<16x8xbf16>, vector<8x256xbf16>, vector<16x256xf32> -> vector<16x256xf32>
    %41 = arith.addf %37, %40 : vector<16x256xf32>
    %c0_21 = arith.constant 0 : index
    %c0_22 = arith.constant 0 : index
    %42 = vector.load %arg7[%c0_21, %c0_22] : memref<16x256xf32, #tpu.memory_space<vmem>>, vector<16x256xf32>
    tpu.vector_store %arg7[%c0_21, %c0_22], %41 {strides = array<i32>} : memref<16x256xf32, #tpu.memory_space<vmem>>, vector<16x256xf32>,
    %43 = vector.extract_strided_slice %6 {offsets = [0, 8], sizes = [16, 8], strides = [1, 1]} : vector<16x96xf32> to vector<16x8xf32>
    %44 = vector.shape_cast %43 : vector<16x8xf32> to vector<2x8x8xf32>
    %45 = vector.extract_strided_slice %6 {offsets = [0, 40], sizes = [16, 8], strides = [1, 1]} : vector<16x96xf32> to vector<16x8xf32>
    %46 = vector.shape_cast %45 : vector<16x8xf32> to vector<2x8x8xf32>
    %47 = vector.extract_strided_slice %6 {offsets = [0, 72], sizes = [16, 8], strides = [1, 1]} : vector<16x96xf32> to vector<16x8xf32>
    %48 = vector.shape_cast %47 : vector<16x8xf32> to vector<2x8x8xf32>
    %49 = arith.truncf %44 : vector<2x8x8xf32> to vector<2x8x8xbf16>
    %50 = arith.truncf %46 : vector<2x8x8xf32> to vector<2x8x8xbf16>
    %cst_23 = arith.constant dense<0.000000e+00> : vector<2x8x8xf32>
    %51 = tpu.matmul %49, %50, %cst_23 {dimension_numbers = #tpu.dot_dimension_numbers<[2], [2], [1], [1], [0, 0, 0, 1, 1, 1], [0], [0]>} : vector<2x8x8xbf16>, vector<2x8x8xbf16>, vector<2x8x8xf32> -> vector<2x8x8xf32>
    %cst_24 = arith.constant 0.353553385 : f32
    %52 = vector.broadcast %cst_24 : f32 to vector<2x8x8xf32>
    %53 = arith.mulf %51, %52 : vector<2x8x8xf32>
    %cst_25 = arith.constant dense<0xFF800000> : vector<2x8xf32>
    %54 = vector.multi_reduction <maximumf>, %53, %cst_25 [2] : vector<2x8x8xf32> to vector<2x8xf32>
    %55 = vector.shape_cast %54 : vector<2x8xf32> to vector<2x8x1xf32>
    %56 = vector.broadcast %55 : vector<2x8x1xf32> to vector<2x8x8xf32>
    %57 = arith.subf %53, %56 : vector<2x8x8xf32>
    %58 = math.exp %57 : vector<2x8x8xf32>
    %cst_26 = arith.constant dense<0.000000e+00> : vector<2x8xf32>
    %59 = vector.multi_reduction <add>, %58, %cst_26 [2] : vector<2x8x8xf32> to vector<2x8xf32>
    %60 = vector.shape_cast %59 : vector<2x8xf32> to vector<2x8x1xf32>
    %61 = arith.truncf %58 : vector<2x8x8xf32> to vector<2x8x8xbf16>
    %62 = arith.truncf %48 : vector<2x8x8xf32> to vector<2x8x8xbf16>
    %cst_27 = arith.constant dense<0.000000e+00> : vector<2x8x8xf32>
    %63 = tpu.matmul %61, %62, %cst_27 {dimension_numbers = #tpu.dot_dimension_numbers<[2], [1], [1], [2], [0, 0, 0, 1, 1, 2], [0], [0]>} : vector<2x8x8xbf16>, vector<2x8x8xbf16>, vector<2x8x8xf32> -> vector<2x8x8xf32>
    %64 = tpu.reciprocal %60 : vector<2x8x1xf32> -> vector<2x8x1xf32>
    %65 = vector.broadcast %64 : vector<2x8x1xf32> to vector<2x8x8xf32>
    %66 = arith.mulf %63, %65 : vector<2x8x8xf32>
    %67 = vector.shape_cast %66 : vector<2x8x8xf32> to vector<16x8xf32>
    %68 = arith.truncf %67 : vector<16x8xf32> to vector<16x8xbf16>
    %c0_28 = arith.constant 0 : index
    %c0_29 = arith.constant 0 : index
    %69 = vector.load %arg7[%c0_28, %c0_29] : memref<16x256xf32, #tpu.memory_space<vmem>>, vector<16x256xf32>
    %c1 = arith.constant 1 : index
    %c0_30 = arith.constant 0 : index
    %c0_31 = arith.constant 0 : index
    %70 = vector.load %arg4[%c1, %c0_30, %c0_31] : memref<4x8x256xbf16, #tpu.memory_space<vmem>>, vector<1x8x256xbf16>
    %71 = vector.shape_cast %70 : vector<1x8x256xbf16> to vector<8x256xbf16>
    %cst_32 = arith.constant dense<0.000000e+00> : vector<16x256xf32>
    %72 = tpu.matmul %68, %71, %cst_32 {dimension_numbers = #tpu.dot_dimension_numbers<[1], [0], [0], [1], [0, 0, 1, 1], [], []>} : vector<16x8xbf16>, vector<8x256xbf16>, vector<16x256xf32> -> vector<16x256xf32>
    %73 = arith.addf %69, %72 : vector<16x256xf32>
    %c0_33 = arith.constant 0 : index
    %c0_34 = arith.constant 0 : index
    %74 = vector.load %arg7[%c0_33, %c0_34] : memref<16x256xf32, #tpu.memory_space<vmem>>, vector<16x256xf32>
    tpu.vector_store %arg7[%c0_33, %c0_34], %73 {strides = array<i32>} : memref<16x256xf32, #tpu.memory_space<vmem>>, vector<16x256xf32>,
    %75 = vector.extract_strided_slice %6 {offsets = [0, 16], sizes = [16, 8], strides = [1, 1]} : vector<16x96xf32> to vector<16x8xf32>
    %76 = vector.shape_cast %75 : vector<16x8xf32> to vector<2x8x8xf32>
    %77 = vector.extract_strided_slice %6 {offsets = [0, 48], sizes = [16, 8], strides = [1, 1]} : vector<16x96xf32> to vector<16x8xf32>
    %78 = vector.shape_cast %77 : vector<16x8xf32> to vector<2x8x8xf32>
    %79 = vector.extract_strided_slice %6 {offsets = [0, 80], sizes = [16, 8], strides = [1, 1]} : vector<16x96xf32> to vector<16x8xf32>
    %80 = vector.shape_cast %79 : vector<16x8xf32> to vector<2x8x8xf32>
    %81 = arith.truncf %76 : vector<2x8x8xf32> to vector<2x8x8xbf16>
    %82 = arith.truncf %78 : vector<2x8x8xf32> to vector<2x8x8xbf16>
    %cst_35 = arith.constant dense<0.000000e+00> : vector<2x8x8xf32>
    %83 = tpu.matmul %81, %82, %cst_35 {dimension_numbers = #tpu.dot_dimension_numbers<[2], [2], [1], [1], [0, 0, 0, 1, 1, 1], [0], [0]>} : vector<2x8x8xbf16>, vector<2x8x8xbf16>, vector<2x8x8xf32> -> vector<2x8x8xf32>
    %cst_36 = arith.constant 0.353553385 : f32
    %84 = vector.broadcast %cst_36 : f32 to vector<2x8x8xf32>
    %85 = arith.mulf %83, %84 : vector<2x8x8xf32>
    %cst_37 = arith.constant dense<0xFF800000> : vector<2x8xf32>
    %86 = vector.multi_reduction <maximumf>, %85, %cst_37 [2] : vector<2x8x8xf32> to vector<2x8xf32>
    %87 = vector.shape_cast %86 : vector<2x8xf32> to vector<2x8x1xf32>
    %88 = vector.broadcast %87 : vector<2x8x1xf32> to vector<2x8x8xf32>
    %89 = arith.subf %85, %88 : vector<2x8x8xf32>
    %90 = math.exp %89 : vector<2x8x8xf32>
    %cst_38 = arith.constant dense<0.000000e+00> : vector<2x8xf32>
    %91 = vector.multi_reduction <add>, %90, %cst_38 [2] : vector<2x8x8xf32> to vector<2x8xf32>
    %92 = vector.shape_cast %91 : vector<2x8xf32> to vector<2x8x1xf32>
    %93 = arith.truncf %90 : vector<2x8x8xf32> to vector<2x8x8xbf16>
    %94 = arith.truncf %80 : vector<2x8x8xf32> to vector<2x8x8xbf16>
    %cst_39 = arith.constant dense<0.000000e+00> : vector<2x8x8xf32>
    %95 = tpu.matmul %93, %94, %cst_39 {dimension_numbers = #tpu.dot_dimension_numbers<[2], [1], [1], [2], [0, 0, 0, 1, 1, 2], [0], [0]>} : vector<2x8x8xbf16>, vector<2x8x8xbf16>, vector<2x8x8xf32> -> vector<2x8x8xf32>
    %96 = tpu.reciprocal %92 : vector<2x8x1xf32> -> vector<2x8x1xf32>
    %97 = vector.broadcast %96 : vector<2x8x1xf32> to vector<2x8x8xf32>
    %98 = arith.mulf %95, %97 : vector<2x8x8xf32>
    %99 = vector.shape_cast %98 : vector<2x8x8xf32> to vector<16x8xf32>
    %100 = arith.truncf %99 : vector<16x8xf32> to vector<16x8xbf16>
    %c0_40 = arith.constant 0 : index
    %c0_41 = arith.constant 0 : index
    %101 = vector.load %arg7[%c0_40, %c0_41] : memref<16x256xf32, #tpu.memory_space<vmem>>, vector<16x256xf32>
    %c2 = arith.constant 2 : index
    %c0_42 = arith.constant 0 : index
    %c0_43 = arith.constant 0 : index
    %102 = vector.load %arg4[%c2, %c0_42, %c0_43] : memref<4x8x256xbf16, #tpu.memory_space<vmem>>, vector<1x8x256xbf16>
    %103 = vector.shape_cast %102 : vector<1x8x256xbf16> to vector<8x256xbf16>
    %cst_44 = arith.constant dense<0.000000e+00> : vector<16x256xf32>
    %104 = tpu.matmul %100, %103, %cst_44 {dimension_numbers = #tpu.dot_dimension_numbers<[1], [0], [0], [1], [0, 0, 1, 1], [], []>} : vector<16x8xbf16>, vector<8x256xbf16>, vector<16x256xf32> -> vector<16x256xf32>
    %105 = arith.addf %101, %104 : vector<16x256xf32>
    %c0_45 = arith.constant 0 : index
    %c0_46 = arith.constant 0 : index
    %106 = vector.load %arg7[%c0_45, %c0_46] : memref<16x256xf32, #tpu.memory_space<vmem>>, vector<16x256xf32>
    tpu.vector_store %arg7[%c0_45, %c0_46], %105 {strides = array<i32>} : memref<16x256xf32, #tpu.memory_space<vmem>>, vector<16x256xf32>,
    %107 = vector.extract_strided_slice %6 {offsets = [0, 24], sizes = [16, 8], strides = [1, 1]} : vector<16x96xf32> to vector<16x8xf32>
    %108 = vector.shape_cast %107 : vector<16x8xf32> to vector<2x8x8xf32>
    %109 = vector.extract_strided_slice %6 {offsets = [0, 56], sizes = [16, 8], strides = [1, 1]} : vector<16x96xf32> to vector<16x8xf32>
    %110 = vector.shape_cast %109 : vector<16x8xf32> to vector<2x8x8xf32>
    %111 = vector.extract_strided_slice %6 {offsets = [0, 88], sizes = [16, 8], strides = [1, 1]} : vector<16x96xf32> to vector<16x8xf32>
    %112 = vector.shape_cast %111 : vector<16x8xf32> to vector<2x8x8xf32>
    %113 = arith.truncf %108 : vector<2x8x8xf32> to vector<2x8x8xbf16>
    %114 = arith.truncf %110 : vector<2x8x8xf32> to vector<2x8x8xbf16>
    %cst_47 = arith.constant dense<0.000000e+00> : vector<2x8x8xf32>
    %115 = tpu.matmul %113, %114, %cst_47 {dimension_numbers = #tpu.dot_dimension_numbers<[2], [2], [1], [1], [0, 0, 0, 1, 1, 1], [0], [0]>} : vector<2x8x8xbf16>, vector<2x8x8xbf16>, vector<2x8x8xf32> -> vector<2x8x8xf32>
    %cst_48 = arith.constant 0.353553385 : f32
    %116 = vector.broadcast %cst_48 : f32 to vector<2x8x8xf32>
    %117 = arith.mulf %115, %116 : vector<2x8x8xf32>
    %cst_49 = arith.constant dense<0xFF800000> : vector<2x8xf32>
    %118 = vector.multi_reduction <maximumf>, %117, %cst_49 [2] : vector<2x8x8xf32> to vector<2x8xf32>
    %119 = vector.shape_cast %118 : vector<2x8xf32> to vector<2x8x1xf32>
    %120 = vector.broadcast %119 : vector<2x8x1xf32> to vector<2x8x8xf32>
    %121 = arith.subf %117, %120 : vector<2x8x8xf32>
    %122 = math.exp %121 : vector<2x8x8xf32>
    %cst_50 = arith.constant dense<0.000000e+00> : vector<2x8xf32>
    %123 = vector.multi_reduction <add>, %122, %cst_50 [2] : vector<2x8x8xf32> to vector<2x8xf32>
    %124 = vector.shape_cast %123 : vector<2x8xf32> to vector<2x8x1xf32>
    %125 = arith.truncf %122 : vector<2x8x8xf32> to vector<2x8x8xbf16>
    %126 = arith.truncf %112 : vector<2x8x8xf32> to vector<2x8x8xbf16>
    %cst_51 = arith.constant dense<0.000000e+00> : vector<2x8x8xf32>
    %127 = tpu.matmul %125, %126, %cst_51 {dimension_numbers = #tpu.dot_dimension_numbers<[2], [1], [1], [2], [0, 0, 0, 1, 1, 2], [0], [0]>} : vector<2x8x8xbf16>, vector<2x8x8xbf16>, vector<2x8x8xf32> -> vector<2x8x8xf32>
    %128 = tpu.reciprocal %124 : vector<2x8x1xf32> -> vector<2x8x1xf32>
    %129 = vector.broadcast %128 : vector<2x8x1xf32> to vector<2x8x8xf32>
    %130 = arith.mulf %127, %129 : vector<2x8x8xf32>
    %131 = vector.shape_cast %130 : vector<2x8x8xf32> to vector<16x8xf32>
    %132 = arith.truncf %131 : vector<16x8xf32> to vector<16x8xbf16>
    %c0_52 = arith.constant 0 : index
    %c0_53 = arith.constant 0 : index
    %133 = vector.load %arg7[%c0_52, %c0_53] : memref<16x256xf32, #tpu.memory_space<vmem>>, vector<16x256xf32>
    %c3 = arith.constant 3 : index
    %c0_54 = arith.constant 0 : index
    %c0_55 = arith.constant 0 : index
    %134 = vector.load %arg4[%c3, %c0_54, %c0_55] : memref<4x8x256xbf16, #tpu.memory_space<vmem>>, vector<1x8x256xbf16>
    %135 = vector.shape_cast %134 : vector<1x8x256xbf16> to vector<8x256xbf16>
    %cst_56 = arith.constant dense<0.000000e+00> : vector<16x256xf32>
    %136 = tpu.matmul %132, %135, %cst_56 {dimension_numbers = #tpu.dot_dimension_numbers<[1], [0], [0], [1], [0, 0, 1, 1], [], []>} : vector<16x8xbf16>, vector<8x256xbf16>, vector<16x256xf32> -> vector<16x256xf32>
    %137 = arith.addf %133, %136 : vector<16x256xf32>
    %c0_57 = arith.constant 0 : index
    %c0_58 = arith.constant 0 : index
    %138 = vector.load %arg7[%c0_57, %c0_58] : memref<16x256xf32, #tpu.memory_space<vmem>>, vector<16x256xf32>
    tpu.vector_store %arg7[%c0_57, %c0_58], %137 {strides = array<i32>} : memref<16x256xf32, #tpu.memory_space<vmem>>, vector<16x256xf32>,
    %c0_59 = arith.constant 0 : index
    %c0_60 = arith.constant 0 : index
    %139 = vector.load %arg7[%c0_59, %c0_60] : memref<16x256xf32, #tpu.memory_space<vmem>>, vector<16x256xf32>
    %140 = vector.shape_cast %139 : vector<16x256xf32> to vector<2x8x256xf32>
    %c0_61 = arith.constant 0 : index
    %c0_62 = arith.constant 0 : index
    %c0_63 = arith.constant 0 : index
    %141 = vector.load %arg6[%c0_61, %c0_62, %c0_63] : memref<2x8x256xf32, #tpu.memory_space<vmem>>, vector<2x8x256xf32>
    tpu.vector_store %arg6[%c0_61, %c0_62, %c0_63], %140 {strides = array<i32>} : memref<2x8x256xf32, #tpu.memory_space<vmem>>, vector<2x8x256xf32>,
    return
  }
  func.func @transform_0(%arg0: i32) -> (i32, i32, i32) {
    %c0_i32 = arith.constant 0 : i32
    %c0_i32_0 = arith.constant 0 : i32
    %c0_i32_1 = arith.constant 0 : i32
    return %arg0, %c0_i32, %c0_i32_0 : i32, i32, i32
  }
  func.func @transform_1(%arg0: i32) -> (i32, i32) {
    %c0_i32 = arith.constant 0 : i32
    %c0_i32_0 = arith.constant 0 : i32
    %c0_i32_1 = arith.constant 0 : i32
    return %c0_i32, %c0_i32_0 : i32, i32
  }
  func.func @transform_2(%arg0: i32) -> (i32, i32) {
    %c0_i32 = arith.constant 0 : i32
    %c0_i32_0 = arith.constant 0 : i32
    %c0_i32_1 = arith.constant 0 : i32
    return %c0_i32, %c0_i32_0 : i32, i32
  }
  func.func @transform_3(%arg0: i32) -> (i32, i32, i32) {
    %c0_i32 = arith.constant 0 : i32
    %c0_i32_0 = arith.constant 0 : i32
    %c0_i32_1 = arith.constant 0 : i32
    %c0_i32_2 = arith.constant 0 : i32
    return %c0_i32, %c0_i32_0, %c0_i32_1 : i32, i32, i32
  }
  func.func @transform_4(%arg0: i32) -> (i32, i32) {
    %c0_i32 = arith.constant 0 : i32
    %c0_i32_0 = arith.constant 0 : i32
    %c0_i32_1 = arith.constant 0 : i32
    return %c0_i32, %c0_i32_0 : i32, i32
  }
  func.func @transform_5(%arg0: i32) -> (i32, i32, i32) {
    %c0_i32 = arith.constant 0 : i32
    %c0_i32_0 = arith.constant 0 : i32
    %c0_i32_1 = arith.constant 0 : i32
    return %arg0, %c0_i32, %c0_i32_0 : i32, i32, i32
  }
}

</mosaic_0001>

<llo_original>
// kernel: tpu_custom_call.1
$region0: #{tpu_custom_call.1}
  #allocation0 [shape = 'u32[]', space=smem, size = 0x4, offset = 0x4, fixed_abs, tag = 'smem constant byte address 0x4 - core index']
  #allocation1 [shape = 'u32[144,128]{1,0:T(1,128)}', space=vmem, size = 0x12000, scoped, tag = 'internal scratch']
  #allocation2 [shape = 'f32[16,256]{1,0:T(8,128)}', space=vmem, size = 0x4000, scoped, tag = 'scratch operand']
  %s0 = inlined_call_operand.hbm [shape: bf16[2,8,32], index: 0, kind: input, shape index: {}]
  %s1 = inlined_call_operand.hbm [shape: bf16[32,96], index: 1, kind: input, shape index: {}]
  %s2 = inlined_call_operand.vmem [shape: f32[1,96], index: 2, kind: input, shape index: {}]
  %s3 = inlined_call_operand.hbm [shape: bf16[4,8,256], index: 3, kind: input, shape index: {}]
  %s4 = inlined_call_operand.vmem [shape: f32[1,256], index: 4, kind: input, shape index: {}]
  %s5 = inlined_call_operand.hbm [shape: f32[2,8,256], index: 5, kind: output, shape index: {}]
  %s6 = sld [smem:[#allocation0]]
  $region42: #{tpu_custom_call.1} parent=0
    _
  %s8 = ssub.s32 1, %s6
  %s9 = scalar_select 0, %s8, %s6
  $region1: #{tpu_custom_call.1} parent=0
    #allocation3 [shape = 'u8[4096]{0}', space=vmem, size = 0x1000, scoped, tag = 'input window, operand 0, single buffered']
    #allocation4 [shape = 's32[1]{0}', space=sflag, size = 0x4, scoped, tag = 'scoped memory for tpu_custom_call.1']
    #allocation5 [shape = 's32[1]{0}', space=sflag, size = 0x4, scoped, tag = 'scoped memory for tpu_custom_call.1']
    #allocation6 [shape = 'u8[8192]{0}', space=vmem, size = 0x2000, scoped, tag = 'input window, operand 1, single buffered']
    #allocation7 [shape = 's32[1]{0}', space=sflag, size = 0x4, scoped, tag = 'scoped memory for tpu_custom_call.1']
    #allocation8 [shape = 'u8[16384]{0}', space=vmem, size = 0x4000, scoped, tag = 'input window, operand 3, single buffered']
    #allocation9 [shape = 'u8[16384]{0}', space=vmem, size = 0x4000, scoped, tag = 'output window, operand 0, single buffered']
    %10 = vsyncpa [#allocation4], 0
    %11 = vsyncpa [#allocation7], 0
    %12 = vsyncpa [#allocation5], 0
    // Predicated region
    $region2: #{tpu_custom_call.1} parent=1 // pred_check
      _
    $region3: #{tpu_custom_call.1} parent=1 // pred_check_branch
      %14 = sbr.rel (0) target = $region5
    $region4: #{tpu_custom_call.1} parent=1 // pred_region
      %s16 = ssub.s32 128, 128
      %17 = vsyncadd [#allocation4], %s16
      %s18 = sshll.u32 [#allocation3], 4
      %s19 = int_to_ptr.vmem [resolvable:$true] %s18
      %24 = dma.hbm_to_vmem [thread:$0]  %s0, 128, %s19, [#allocation4], 64, 64, 4
    $region5: #{tpu_custom_call.1} parent=1 // pred_fallthru
      _
    // Predicated region
    $region6: #{tpu_custom_call.1} parent=1 // pred_check
      _
    $region7: #{tpu_custom_call.1} parent=1 // pred_check_branch
      %26 = sbr.rel (0) target = $region9
    $region8: #{tpu_custom_call.1} parent=1 // pred_region
      %s28 = ssub.s32 256, 256
      %29 = vsyncadd [#allocation7], %s28
      %s30 = sshll.u32 [#allocation6], 4
      %s31 = int_to_ptr.vmem [resolvable:$true] %s30
      %36 = dma.hbm_to_vmem [thread:$0]  %s1, 256, %s31, [#allocation7], 64, 64, 4
    $region9: #{tpu_custom_call.1} parent=1 // pred_fallthru
      _
    // Predicated region
    $region10: #{tpu_custom_call.1} parent=1 // pred_check
      _
    $region11: #{tpu_custom_call.1} parent=1 // pred_check_branch
      %38 = sbr.rel (0) target = $region13
    $region12: #{tpu_custom_call.1} parent=1 // pred_region
      _
    $region13: #{tpu_custom_call.1} parent=1 // pred_fallthru
      _
    // Predicated region
    $region14: #{tpu_custom_call.1} parent=1 // pred_check
      _
    $region15: #{tpu_custom_call.1} parent=1 // pred_check_branch
      %40 = sbr.rel (0) target = $region17
    $region16: #{tpu_custom_call.1} parent=1 // pred_region
      %s42 = ssub.s32 512, 512
      %43 = vsyncadd [#allocation7], %s42
      %s44 = sshll.u32 [#allocation8], 4
      %s45 = int_to_ptr.vmem [resolvable:$true] %s44
      %50 = dma.hbm_to_vmem [thread:$0]  %s3, 512, %s45, [#allocation7], 128, 128, 8
    $region17: #{tpu_custom_call.1} parent=1 // pred_fallthru
      _
    // Predicated region
    $region18: #{tpu_custom_call.1} parent=1 // pred_check
      _
    $region19: #{tpu_custom_call.1} parent=1 // pred_check_branch
      %52 = sbr.rel (0) target = $region21
    $region20: #{tpu_custom_call.1} parent=1 // pred_region
      _
    $region21: #{tpu_custom_call.1} parent=1 // pred_fallthru
      _
    // Predicated region
    $region22: #{tpu_custom_call.1} parent=1 // pred_check
      _
    $region23: #{tpu_custom_call.1} parent=1 // pred_check_branch
      %54 = sbr.rel (0) target = $region25
    $region24: #{tpu_custom_call.1} parent=1 // pred_region
      %55 = dma.done [#allocation4], 128
    $region25: #{tpu_custom_call.1} parent=1 // pred_fallthru
      _
    // Predicated region
    $region26: #{tpu_custom_call.1} parent=1 // pred_check
      _
    $region27: #{tpu_custom_call.1} parent=1 // pred_check_branch
      %57 = sbr.rel (0) target = $region29
    $region28: #{tpu_custom_call.1} parent=1 // pred_region
      %58 = dma.done [#allocation7], 256
    $region29: #{tpu_custom_call.1} parent=1 // pred_fallthru
      _
    // Predicated region
    $region30: #{tpu_custom_call.1} parent=1 // pred_check
      _
    $region31: #{tpu_custom_call.1} parent=1 // pred_check_branch
      %60 = sbr.rel (0) target = $region33
    $region32: #{tpu_custom_call.1} parent=1 // pred_region
      %61 = dma.done [#allocation7], 512
    $region33: #{tpu_custom_call.1} parent=1 // pred_fallthru
      _
    %v63 = vld [vmem:[#allocation3] sm:$0xf]
    %v64 = vld [vmem:[#allocation3 + $0x4] sm:$0xf]
    %v65 = vld [vmem:[#allocation6] sm:$0xf]
    %v66 = vld [vmem:[#allocation6 + $0x4] sm:$0xf]
    %v67 = vld [vmem:[#allocation6 + $0x8] sm:$0xf]
    %v68 = vld [vmem:[#allocation6 + $0xc] sm:$0xf]
    %v69 = vld [vmem:[%s2] sm:$0x1]
    %v71 = vlaneseq
    %v72 = vshrl.u32 %v71, 7
    %v73 = vsub.s32 0, %v72
    %v74 = vrot.slane %v69, %v73
    %v78 = vunpack.c.l.b16 %v63
    %v79 = vunpack.c.l.b16 %v64
    %v80 = vpack.c.b16 %v79, %v78
    %v85 = vunpack.c.l.b16 %v65
    %v86 = vunpack.c.l.b16 %v66
    %v87 = vunpack.c.l.b16 %v67
    %v88 = vunpack.c.l.b16 %v68
    %v89 = vpack.c.b16 %v86, %v85
    %v90 = vpack.c.b16 %v88, %v87
    %vm93 = vcmask 261120
    %v95 = vsel %vm93, %v80, 0
    %97 = vmatprep.subr.bf16.mxu0 0
    %98 = vmatpush1.bf16.msra.mxu0 %v89
    %99 = vmatprep.subr.bf16.mxu0 0
    %100 = vmatpush1.bf16.msra.mxu0 %v90
    %101 = vmatprep.subr.bf16.mxu0 0
    %102 = vmatpush1.bf16.msra.mxu0 0
    %103 = vmatprep.subr.bf16.mxu0 0
    %104 = vmatpush1.bf16.msra.mxu0 0
    %105 = vmatprep.subr.bf16.mxu0 0
    %106 = vmatpush1.bf16.msra.mxu0 0
    %107 = vmatprep.subr.bf16.mxu0 0
    %108 = vmatpush1.bf16.msra.mxu0 0
    %109 = vmatprep.subr.bf16.mxu0 0
    %110 = vmatpush1.bf16.msra.mxu0 0
    %111 = vmatprep.subr.bf16.mxu0 0
    %112 = vmatpush1.bf16.msra.mxu0 0
    %113 = vmatprep.subr.bf16.mxu0 0
    %114 = vmatpush1.bf16.msra.mxu0 0
    %115 = vmatprep.subr.bf16.mxu0 0
    %116 = vmatpush1.bf16.msra.mxu0 0
    %117 = vmatprep.subr.bf16.mxu0 0
    %118 = vmatpush1.bf16.msra.mxu0 0
    %119 = vmatprep.subr.bf16.mxu0 0
    %120 = vmatpush1.bf16.msra.mxu0 0
    %121 = vmatprep.subr.bf16.mxu0 0
    %122 = vmatpush1.bf16.msra.mxu0 0
    %123 = vmatprep.subr.bf16.mxu0 0
    %124 = vmatpush1.bf16.msra.mxu0 0
    %125 = vmatprep.subr.bf16.mxu0 0
    %126 = vmatpush1.bf16.msra.mxu0 0
    %127 = vmatprep.subr.bf16.mxu0 0
    %128 = vmatpush1.bf16.msra.mxu0 0
    %129 = vmatprep.mubr.bf16.mxu0 0
    %130 = vmatmul.mubr.bf16.gmra.mrb[0].mxu0 %v95
    %v131 = vpop.f32.mrb[0].mxu0
    %v132 = vadd.f32 %v74, %v131
    %v133 = vpop.f32.mrb[0].mxu0
    %v134 = vpop.f32.mrb[0].mxu0
    %v135 = vadd.f32 %v74, %v134
    %v136 = vpop.f32.mrb[0].mxu0
    %137 = vdwg.mxu0
    %v138 = vld [vmem:[%s4] sm:$0x3]
    %v140 = vlaneseq
    %v141 = vshrl.u32 %v140, 7
    %v142 = vsub.s32 0, %v141
    %v143 = vrot.slane %v138, %v142
    %v144 = vlaneseq
    %v145 = vshrl.u32 %v144, 7
    %v146 = vsub.s32 1, %v145
    %v147 = vrot.slane %v138, %v146
    %150 = vst [vmem:[#allocation2] sm:$0xff] %v143
    %151 = vst [vmem:[#allocation2 + $0x8] sm:$0xff] %v147
    %152 = vst [vmem:[#allocation2 + $0x10] sm:$0xff] %v143
    %153 = vst [vmem:[#allocation2 + $0x18] sm:$0xff] %v147
    %v154 = vpack.c.bf16 %v132, %v132
    %v155 = vpack.c.bf16 %v135, %v135
    %157 = vrot.lane.b32.xlu0 %v154, 96
    %v158 = vpop.permute.xlu0 %157
    %vm159 = vcmask 64512
    %v161 = vsel %vm159, %v154, 0
    %v164 = vsel %vm159, %v158, 0
    %166 = vmatprep.subr.bf16.mxu0 0
    %167 = vmatpush1.bf16.xpose.msra.mxu0 %v164
    %168 = vmatprep.subr.bf16.mxu0 0
    %169 = vmatpush1.bf16.xpose.msra.mxu0 0
    %170 = vmatprep.subr.bf16.mxu0 0
    %171 = vmatpush1.bf16.xpose.msra.mxu0 0
    %172 = vmatprep.subr.bf16.mxu0 0
    %173 = vmatpush1.bf16.xpose.msra.mxu0 0
    %174 = vmatprep.subr.bf16.mxu0 0
    %175 = vmatpush1.bf16.xpose.msra.mxu0 0
    %176 = vmatprep.subr.bf16.mxu0 0
    %177 = vmatpush1.bf16.xpose.msra.mxu0 0
    %178 = vmatprep.subr.bf16.mxu0 0
    %179 = vmatpush1.bf16.xpose.msra.mxu0 0
    %180 = vmatprep.subr.bf16.mxu0 0
    %181 = vmatpush1.bf16.xpose.msra.mxu0 0
    %182 = vmatprep.subr.bf16.mxu0 0
    %183 = vmatpush1.bf16.xpose.msra.mxu0 0
    %184 = vmatprep.subr.bf16.mxu0 0
    %185 = vmatpush1.bf16.xpose.msra.mxu0 0
    %186 = vmatprep.subr.bf16.mxu0 0
    %187 = vmatpush1.bf16.xpose.msra.mxu0 0
    %188 = vmatprep.subr.bf16.mxu0 0
    %189 = vmatpush1.bf16.xpose.msra.mxu0 0
    %190 = vmatprep.subr.bf16.mxu0 0
    %191 = vmatpush1.bf16.xpose.msra.mxu0 0
    %192 = vmatprep.subr.bf16.mxu0 0
    %193 = vmatpush1.bf16.xpose.msra.mxu0 0
    %194 = vmatprep.subr.bf16.mxu0 0
    %195 = vmatpush1.bf16.xpose.msra.mxu0 0
    %196 = vmatprep.subr.bf16.mxu0 0
    %197 = vmatpush1.bf16.xpose.msra.mxu0 0
    %198 = vmatprep.mubr.bf16.mxu0 0
    %199 = vmatmul.mubr.bf16.gmra.mrb[0].mxu0 %v161
    %v200 = vpop.f32.mrb[0].mxu0
    %v201 = vadd.f32 0.0, %v200
    %v202 = vpop.f32.mrb[0].mxu0
    %v203 = vpop.f32.mrb[0].mxu0
    %v204 = vpop.f32.mrb[0].mxu0
    %205 = vdwg.mxu0
    %207 = vrot.lane.b32.xlu0 %v155, 96
    %v208 = vpop.permute.xlu0 %207
    %v210 = vsel %vm159, %v155, 0
    %v213 = vsel %vm159, %v208, 0
    %215 = vmatprep.subr.bf16.mxu0 0
    %216 = vmatpush1.bf16.xpose.msra.mxu0 %v213
    %217 = vmatprep.subr.bf16.mxu0 0
    %218 = vmatpush1.bf16.xpose.msra.mxu0 0
    %219 = vmatprep.subr.bf16.mxu0 0
    %220 = vmatpush1.bf16.xpose.msra.mxu0 0
    %221 = vmatprep.subr.bf16.mxu0 0
    %222 = vmatpush1.bf16.xpose.msra.mxu0 0
    %223 = vmatprep.subr.bf16.mxu0 0
    %224 = vmatpush1.bf16.xpose.msra.mxu0 0
    %225 = vmatprep.subr.bf16.mxu0 0
    %226 = vmatpush1.bf16.xpose.msra.mxu0 0
    %227 = vmatprep.subr.bf16.mxu0 0
    %228 = vmatpush1.bf16.xpose.msra.mxu0 0
    %229 = vmatprep.subr.bf16.mxu0 0
    %230 = vmatpush1.bf16.xpose.msra.mxu0 0
    %231 = vmatprep.subr.bf16.mxu0 0
    %232 = vmatpush1.bf16.xpose.msra.mxu0 0
    %233 = vmatprep.subr.bf16.mxu0 0
    %234 = vmatpush1.bf16.xpose.msra.mxu0 0
    %235 = vmatprep.subr.bf16.mxu0 0
    %236 = vmatpush1.bf16.xpose.msra.mxu0 0
    %237 = vmatprep.subr.bf16.mxu0 0
    %238 = vmatpush1.bf16.xpose.msra.mxu0 0
    %239 = vmatprep.subr.bf16.mxu0 0
    %240 = vmatpush1.bf16.xpose.msra.mxu0 0
    %241 = vmatprep.subr.bf16.mxu0 0
    %242 = vmatpush1.bf16.xpose.msra.mxu0 0
    %243 = vmatprep.subr.bf16.mxu0 0
    %244 = vmatpush1.bf16.xpose.msra.mxu0 0
    %245 = vmatprep.subr.bf16.mxu0 0
    %246 = vmatpush1.bf16.xpose.msra.mxu0 0
    %247 = vmatprep.mubr.bf16.mxu0 0
    %248 = vmatmul.mubr.bf16.gmra.mrb[0].mxu0 %v210
    %v249 = vpop.f32.mrb[0].mxu0
    %v250 = vadd.f32 0.0, %v249
    %v251 = vpop.f32.mrb[0].mxu0
    %v252 = vpop.f32.mrb[0].mxu0
    %v253 = vpop.f32.mrb[0].mxu0
    %254 = vdwg.mxu0
    %v255 = vmul.f32 %v201, 0.35355338
    %v256 = vmul.f32 %v250, 0.35355338
    %v257 = vsel %vm159, %v255, -inf
    %258 = vmax.xlane.f32.xlu0 %v257
    %v259 = vpop.xlane.xlu0 %258
    %v260 = vsel %vm159, %v256, -inf
    %261 = vmax.xlane.f32.xlu0 %v260
    %v262 = vpop.xlane.xlu0 %261
    %v263 = vsub.f32 %v255, %v259
    %v264 = vsub.f32 %v256, %v262
    %v265 = vmul.f32 %v263, 1.442695
    %v266 = vpow.pop %v265
    %v267 = vmul.f32 %v264, 1.442695
    %v268 = vpow.pop %v267
    %v269 = vsel %vm159, %v266, 0.0
    %270 = vadd.xlane.f32.xlu0 %v269
    %v271 = vpop.xlane.xlu0 %270
    %v272 = vsel %vm159, %v268, 0.0
    %273 = vadd.xlane.f32.xlu0 %v272
    %v274 = vpop.xlane.xlu0 %273
    %v275 = vpack.c.bf16 %v266, %v266
    %v276 = vpack.c.bf16 %v268, %v268
    %277 = vrot.lane.b32.xlu0 %v154, 64
    %v278 = vpop.permute.xlu0 %277
    %v280 = vsel %vm159, %v275, 0
    %vm282 = vcmask 1043456
    %v284 = vsel %vm282, %v278, 0
    %286 = vmatprep.subr.bf16.mxu0 0
    %287 = vmatpush1.bf16.msra.mxu0 %v284
    %288 = vmatprep.subr.bf16.mxu0 0
    %289 = vmatpush1.bf16.msra.mxu0 0
    %290 = vmatprep.subr.bf16.mxu0 0
    %291 = vmatpush1.bf16.msra.mxu0 0
    %292 = vmatprep.subr.bf16.mxu0 0
    %293 = vmatpush1.bf16.msra.mxu0 0
    %294 = vmatprep.subr.bf16.mxu0 0
    %295 = vmatpush1.bf16.msra.mxu0 0
    %296 = vmatprep.subr.bf16.mxu0 0
    %297 = vmatpush1.bf16.msra.mxu0 0
    %298 = vmatprep.subr.bf16.mxu0 0
    %299 = vmatpush1.bf16.msra.mxu0 0
    %300 = vmatprep.subr.bf16.mxu0 0
    %301 = vmatpush1.bf16.msra.mxu0 0
    %302 = vmatprep.subr.bf16.mxu0 0
    %303 = vmatpush1.bf16.msra.mxu0 0
    %304 = vmatprep.subr.bf16.mxu0 0
    %305 = vmatpush1.bf16.msra.mxu0 0
    %306 = vmatprep.subr.bf16.mxu0 0
    %307 = vmatpush1.bf16.msra.mxu0 0
    %308 = vmatprep.subr.bf16.mxu0 0
    %309 = vmatpush1.bf16.msra.mxu0 0
    %310 = vmatprep.subr.bf16.mxu0 0
    %311 = vmatpush1.bf16.msra.mxu0 0
    %312 = vmatprep.subr.bf16.mxu0 0
    %313 = vmatpush1.bf16.msra.mxu0 0
    %314 = vmatprep.subr.bf16.mxu0 0
    %315 = vmatpush1.bf16.msra.mxu0 0
    %316 = vmatprep.subr.bf16.mxu0 0
    %317 = vmatpush1.bf16.msra.mxu0 0
    %318 = vmatprep.mubr.bf16.mxu0 0
    %319 = vmatmul.mubr.bf16.gmra.mrb[0].mxu0 %v280
    %v320 = vpop.f32.mrb[0].mxu0
    %v321 = vadd.f32 0.0, %v320
    %v322 = vpop.f32.mrb[0].mxu0
    %v323 = vpop.f32.mrb[0].mxu0
    %v324 = vpop.f32.mrb[0].mxu0
    %325 = vdwg.mxu0
    %326 = vrot.lane.b32.xlu0 %v155, 64
    %v327 = vpop.permute.xlu0 %326
    %v329 = vsel %vm159, %v276, 0
    %v332 = vsel %vm282, %v327, 0
    %334 = vmatprep.subr.bf16.mxu0 0
    %335 = vmatpush1.bf16.msra.mxu0 %v332
    %336 = vmatprep.subr.bf16.mxu0 0
    %337 = vmatpush1.bf16.msra.mxu0 0
    %338 = vmatprep.subr.bf16.mxu0 0
    %339 = vmatpush1.bf16.msra.mxu0 0
    %340 = vmatprep.subr.bf16.mxu0 0
    %341 = vmatpush1.bf16.msra.mxu0 0
    %342 = vmatprep.subr.bf16.mxu0 0
    %343 = vmatpush1.bf16.msra.mxu0 0
    %344 = vmatprep.subr.bf16.mxu0 0
    %345 = vmatpush1.bf16.msra.mxu0 0
    %346 = vmatprep.subr.bf16.mxu0 0
    %347 = vmatpush1.bf16.msra.mxu0 0
    %348 = vmatprep.subr.bf16.mxu0 0
    %349 = vmatpush1.bf16.msra.mxu0 0
    %350 = vmatprep.subr.bf16.mxu0 0
    %351 = vmatpush1.bf16.msra.mxu0 0
    %352 = vmatprep.subr.bf16.mxu0 0
    %353 = vmatpush1.bf16.msra.mxu0 0
    %354 = vmatprep.subr.bf16.mxu0 0
    %355 = vmatpush1.bf16.msra.mxu0 0
    %356 = vmatprep.subr.bf16.mxu0 0
    %357 = vmatpush1.bf16.msra.mxu0 0
    %358 = vmatprep.subr.bf16.mxu0 0
    %359 = vmatpush1.bf16.msra.mxu0 0
    %360 = vmatprep.subr.bf16.mxu0 0
    %361 = vmatpush1.bf16.msra.mxu0 0
    %362 = vmatprep.subr.bf16.mxu0 0
    %363 = vmatpush1.bf16.msra.mxu0 0
    %364 = vmatprep.subr.bf16.mxu0 0
    %365 = vmatpush1.bf16.msra.mxu0 0
    %366 = vmatprep.mubr.bf16.mxu0 0
    %367 = vmatmul.mubr.bf16.gmra.mrb[0].mxu0 %v329
    %v368 = vpop.f32.mrb[0].mxu0
    %v369 = vadd.f32 0.0, %v368
    %v370 = vpop.f32.mrb[0].mxu0
    %v371 = vpop.f32.mrb[0].mxu0
    %v372 = vpop.f32.mrb[0].mxu0
    %373 = vdwg.mxu0
    %v374 = vrcp.pop %v271
    %v375 = vrcp.pop %v274
    %v376 = vmul.f32 %v321, %v374
    %v377 = vmul.f32 %v369, %v375
    %v378 = vpack.c.bf16 %v377, %v376
    %v379 = vld [vmem:[#allocation2] sm:$0xff]
    %v380 = vld [vmem:[#allocation2 + $0x8] sm:$0xff]
    %v381 = vld [vmem:[#allocation2 + $0x10] sm:$0xff]
    %v382 = vld [vmem:[#allocation2 + $0x18] sm:$0xff]
    %v383 = vld [vmem:[#allocation8] sm:$0xff]
    %v385 = vunpack.c.l.b16 %v383
    %v386 = vunpack.c.h.b16 %v383
    %v387 = vpack.c.b16 %v385, %v385
    %v388 = vpack.c.b16 %v386, %v386
    %v390 = vsel %vm159, %v378, 0
    %v393 = vsel %vm282, %v387, 0
    %v396 = vsel %vm282, %v388, 0
    %398 = vmatprep.subr.bf16.mxu0 %v396
    %399 = vmatpush1.bf16.msra.mxu0 %v393
    %400 = vmatprep.subr.bf16.mxu0 0
    %401 = vmatpush1.bf16.msra.mxu0 0
    %402 = vmatprep.subr.bf16.mxu0 0
    %403 = vmatpush1.bf16.msra.mxu0 0
    %404 = vmatprep.subr.bf16.mxu0 0
    %405 = vmatpush1.bf16.msra.mxu0 0
    %406 = vmatprep.subr.bf16.mxu0 0
    %407 = vmatpush1.bf16.msra.mxu0 0
    %408 = vmatprep.subr.bf16.mxu0 0
    %409 = vmatpush1.bf16.msra.mxu0 0
    %410 = vmatprep.subr.bf16.mxu0 0
    %411 = vmatpush1.bf16.msra.mxu0 0
    %412 = vmatprep.subr.bf16.mxu0 0
    %413 = vmatpush1.bf16.msra.mxu0 0
    %414 = vmatprep.subr.bf16.mxu0 0
    %415 = vmatpush1.bf16.msra.mxu0 0
    %416 = vmatprep.subr.bf16.mxu0 0
    %417 = vmatpush1.bf16.msra.mxu0 0
    %418 = vmatprep.subr.bf16.mxu0 0
    %419 = vmatpush1.bf16.msra.mxu0 0
    %420 = vmatprep.subr.bf16.mxu0 0
    %421 = vmatpush1.bf16.msra.mxu0 0
    %422 = vmatprep.subr.bf16.mxu0 0
    %423 = vmatpush1.bf16.msra.mxu0 0
    %424 = vmatprep.subr.bf16.mxu0 0
    %425 = vmatpush1.bf16.msra.mxu0 0
    %426 = vmatprep.subr.bf16.mxu0 0
    %427 = vmatpush1.bf16.msra.mxu0 0
    %428 = vmatprep.subr.bf16.mxu0 0
    %429 = vmatpush1.bf16.msra.mxu0 0
    %430 = vmatprep.mubr.bf16.mxu0 0
    %431 = vmatmul.mubr.bf16.gmra.mrb[0].mxu0 %v390
    %v432 = vpop.f32.mrb[0].mxu0
    %v433 = vadd.f32 0.0, %v432
    %v434 = vpop.f32.mrb[0].mxu0
    %v435 = vadd.f32 0.0, %v434
    %v436 = vpop.f32.mrb[0].mxu0
    %v437 = vadd.f32 0.0, %v436
    %v438 = vpop.f32.mrb[0].mxu0
    %v439 = vadd.f32 0.0, %v438
    %440 = vdwg.mxu0
    %v441 = vadd.f32 %v379, %v433
    %v442 = vadd.f32 %v380, %v435
    %v443 = vadd.f32 %v381, %v437
    %v444 = vadd.f32 %v382, %v439
    %445 = vst [vmem:[#allocation2] sm:$0xff] %v441
    %446 = vst [vmem:[#allocation2 + $0x8] sm:$0xff] %v442
    %447 = vst [vmem:[#allocation2 + $0x10] sm:$0xff] %v443
    %448 = vst [vmem:[#allocation2 + $0x18] sm:$0xff] %v444
    %449 = vrot.lane.b32.xlu0 %v154, 120
    %v450 = vpop.permute.xlu0 %449
    %451 = vrot.lane.b32.xlu0 %v154, 88
    %v452 = vpop.permute.xlu0 %451
    %v454 = vsel %vm159, %v450, 0
    %v457 = vsel %vm159, %v452, 0
    %459 = vmatprep.subr.bf16.mxu0 0
    %460 = vmatpush1.bf16.xpose.msra.mxu0 %v457
    %461 = vmatprep.subr.bf16.mxu0 0
    %462 = vmatpush1.bf16.xpose.msra.mxu0 0
    %463 = vmatprep.subr.bf16.mxu0 0
    %464 = vmatpush1.bf16.xpose.msra.mxu0 0
    %465 = vmatprep.subr.bf16.mxu0 0
    %466 = vmatpush1.bf16.xpose.msra.mxu0 0
    %467 = vmatprep.subr.bf16.mxu0 0
    %468 = vmatpush1.bf16.xpose.msra.mxu0 0
    %469 = vmatprep.subr.bf16.mxu0 0
    %470 = vmatpush1.bf16.xpose.msra.mxu0 0
    %471 = vmatprep.subr.bf16.mxu0 0
    %472 = vmatpush1.bf16.xpose.msra.mxu0 0
    %473 = vmatprep.subr.bf16.mxu0 0
    %474 = vmatpush1.bf16.xpose.msra.mxu0 0
    %475 = vmatprep.subr.bf16.mxu0 0
    %476 = vmatpush1.bf16.xpose.msra.mxu0 0
    %477 = vmatprep.subr.bf16.mxu0 0
    %478 = vmatpush1.bf16.xpose.msra.mxu0 0
    %479 = vmatprep.subr.bf16.mxu0 0
    %480 = vmatpush1.bf16.xpose.msra.mxu0 0
    %481 = vmatprep.subr.bf16.mxu0 0
    %482 = vmatpush1.bf16.xpose.msra.mxu0 0
    %483 = vmatprep.subr.bf16.mxu0 0
    %484 = vmatpush1.bf16.xpose.msra.mxu0 0
    %485 = vmatprep.subr.bf16.mxu0 0
    %486 = vmatpush1.bf16.xpose.msra.mxu0 0
    %487 = vmatprep.subr.bf16.mxu0 0
    %488 = vmatpush1.bf16.xpose.msra.mxu0 0
    %489 = vmatprep.subr.bf16.mxu0 0
    %490 = vmatpush1.bf16.xpose.msra.mxu0 0
    %491 = vmatprep.mubr.bf16.mxu0 0
    %492 = vmatmul.mubr.bf16.gmra.mrb[0].mxu0 %v454
    %v493 = vpop.f32.mrb[0].mxu0
    %v494 = vadd.f32 0.0, %v493
    %v495 = vpop.f32.mrb[0].mxu0
    %v496 = vpop.f32.mrb[0].mxu0
    %v497 = vpop.f32.mrb[0].mxu0
    %498 = vdwg.mxu0
    %499 = vrot.lane.b32.xlu0 %v155, 120
    %v500 = vpop.permute.xlu0 %499
    %501 = vrot.lane.b32.xlu0 %v155, 88
    %v502 = vpop.permute.xlu0 %501
    %v504 = vsel %vm159, %v500, 0
    %v507 = vsel %vm159, %v502, 0
    %509 = vmatprep.subr.bf16.mxu0 0
    %510 = vmatpush1.bf16.xpose.msra.mxu0 %v507
    %511 = vmatprep.subr.bf16.mxu0 0
    %512 = vmatpush1.bf16.xpose.msra.mxu0 0
    %513 = vmatprep.subr.bf16.mxu0 0
    %514 = vmatpush1.bf16.xpose.msra.mxu0 0
    %515 = vmatprep.subr.bf16.mxu0 0
    %516 = vmatpush1.bf16.xpose.msra.mxu0 0
    %517 = vmatprep.subr.bf16.mxu0 0
    %518 = vmatpush1.bf16.xpose.msra.mxu0 0
    %519 = vmatprep.subr.bf16.mxu0 0
    %520 = vmatpush1.bf16.xpose.msra.mxu0 0
    %521 = vmatprep.subr.bf16.mxu0 0
    %522 = vmatpush1.bf16.xpose.msra.mxu0 0
    %523 = vmatprep.subr.bf16.mxu0 0
    %524 = vmatpush1.bf16.xpose.msra.mxu0 0
    %525 = vmatprep.subr.bf16.mxu0 0
    %526 = vmatpush1.bf16.xpose.msra.mxu0 0
    %527 = vmatprep.subr.bf16.mxu0 0
    %528 = vmatpush1.bf16.xpose.msra.mxu0 0
    %529 = vmatprep.subr.bf16.mxu0 0
    %530 = vmatpush1.bf16.xpose.msra.mxu0 0
    %531 = vmatprep.subr.bf16.mxu0 0
    %532 = vmatpush1.bf16.xpose.msra.mxu0 0
    %533 = vmatprep.subr.bf16.mxu0 0
    %534 = vmatpush1.bf16.xpose.msra.mxu0 0
    %535 = vmatprep.subr.bf16.mxu0 0
    %536 = vmatpush1.bf16.xpose.msra.mxu0 0
    %537 = vmatprep.subr.bf16.mxu0 0
    %538 = vmatpush1.bf16.xpose.msra.mxu0 0
    %539 = vmatprep.subr.bf16.mxu0 0
    %540 = vmatpush1.bf16.xpose.msra.mxu0 0
    %541 = vmatprep.mubr.bf16.mxu0 0
    %542 = vmatmul.mubr.bf16.gmra.mrb[0].mxu0 %v504
    %v543 = vpop.f32.mrb[0].mxu0
    %v544 = vadd.f32 0.0, %v543
    %v545 = vpop.f32.mrb[0].mxu0
    %v546 = vpop.f32.mrb[0].mxu0
    %v547 = vpop.f32.mrb[0].mxu0
    %548 = vdwg.mxu0
    %v549 = vmul.f32 %v494, 0.35355338
    %v550 = vmul.f32 %v544, 0.35355338
    %v551 = vsel %vm159, %v549, -inf
    %552 = vmax.xlane.f32.xlu0 %v551
    %v553 = vpop.xlane.xlu0 %552
    %v554 = vsel %vm159, %v550, -inf
    %555 = vmax.xlane.f32.xlu0 %v554
    %v556 = vpop.xlane.xlu0 %555
    %v557 = vsub.f32 %v549, %v553
    %v558 = vsub.f32 %v550, %v556
    %v559 = vmul.f32 %v557, 1.442695
    %v560 = vpow.pop %v559
    %v561 = vmul.f32 %v558, 1.442695
    %v562 = vpow.pop %v561
    %v563 = vsel %vm159, %v560, 0.0
    %564 = vadd.xlane.f32.xlu0 %v563
    %v565 = vpop.xlane.xlu0 %564
    %v566 = vsel %vm159, %v562, 0.0
    %567 = vadd.xlane.f32.xlu0 %v566
    %v568 = vpop.xlane.xlu0 %567
    %v569 = vpack.c.bf16 %v560, %v560
    %v570 = vpack.c.bf16 %v562, %v562
    %571 = vrot.lane.b32.xlu0 %v154, 56
    %v572 = vpop.permute.xlu0 %571
    %v574 = vsel %vm159, %v569, 0
    %v577 = vsel %vm282, %v572, 0
    %579 = vmatprep.subr.bf16.mxu0 0
    %580 = vmatpush1.bf16.msra.mxu0 %v577
    %581 = vmatprep.subr.bf16.mxu0 0
    %582 = vmatpush1.bf16.msra.mxu0 0
    %583 = vmatprep.subr.bf16.mxu0 0
    %584 = vmatpush1.bf16.msra.mxu0 0
    %585 = vmatprep.subr.bf16.mxu0 0
    %586 = vmatpush1.bf16.msra.mxu0 0
    %587 = vmatprep.subr.bf16.mxu0 0
    %588 = vmatpush1.bf16.msra.mxu0 0
    %589 = vmatprep.subr.bf16.mxu0 0
    %590 = vmatpush1.bf16.msra.mxu0 0
    %591 = vmatprep.subr.bf16.mxu0 0
    %592 = vmatpush1.bf16.msra.mxu0 0
    %593 = vmatprep.subr.bf16.mxu0 0
    %594 = vmatpush1.bf16.msra.mxu0 0
    %595 = vmatprep.subr.bf16.mxu0 0
    %596 = vmatpush1.bf16.msra.mxu0 0
    %597 = vmatprep.subr.bf16.mxu0 0
    %598 = vmatpush1.bf16.msra.mxu0 0
    %599 = vmatprep.subr.bf16.mxu0 0
    %600 = vmatpush1.bf16.msra.mxu0 0
    %601 = vmatprep.subr.bf16.mxu0 0
    %602 = vmatpush1.bf16.msra.mxu0 0
    %603 = vmatprep.subr.bf16.mxu0 0
    %604 = vmatpush1.bf16.msra.mxu0 0
    %605 = vmatprep.subr.bf16.mxu0 0
    %606 = vmatpush1.bf16.msra.mxu0 0
    %607 = vmatprep.subr.bf16.mxu0 0
    %608 = vmatpush1.bf16.msra.mxu0 0
    %609 = vmatprep.subr.bf16.mxu0 0
    %610 = vmatpush1.bf16.msra.mxu0 0
    %611 = vmatprep.mubr.bf16.mxu0 0
    %612 = vmatmul.mubr.bf16.gmra.mrb[0].mxu0 %v574
    %v613 = vpop.f32.mrb[0].mxu0
    %v614 = vadd.f32 0.0, %v613
    %v615 = vpop.f32.mrb[0].mxu0
    %v616 = vpop.f32.mrb[0].mxu0
    %v617 = vpop.f32.mrb[0].mxu0
    %618 = vdwg.mxu0
    %619 = vrot.lane.b32.xlu0 %v155, 56
    %v620 = vpop.permute.xlu0 %619
    %v622 = vsel %vm159, %v570, 0
    %v625 = vsel %vm282, %v620, 0
    %627 = vmatprep.subr.bf16.mxu0 0
    %628 = vmatpush1.bf16.msra.mxu0 %v625
    %629 = vmatprep.subr.bf16.mxu0 0
    %630 = vmatpush1.bf16.msra.mxu0 0
    %631 = vmatprep.subr.bf16.mxu0 0
    %632 = vmatpush1.bf16.msra.mxu0 0
    %633 = vmatprep.subr.bf16.mxu0 0
    %634 = vmatpush1.bf16.msra.mxu0 0
    %635 = vmatprep.subr.bf16.mxu0 0
    %636 = vmatpush1.bf16.msra.mxu0 0
    %637 = vmatprep.subr.bf16.mxu0 0
    %638 = vmatpush1.bf16.msra.mxu0 0
    %639 = vmatprep.subr.bf16.mxu0 0
    %640 = vmatpush1.bf16.msra.mxu0 0
    %641 = vmatprep.subr.bf16.mxu0 0
    %642 = vmatpush1.bf16.msra.mxu0 0
    %643 = vmatprep.subr.bf16.mxu0 0
    %644 = vmatpush1.bf16.msra.mxu0 0
    %645 = vmatprep.subr.bf16.mxu0 0
    %646 = vmatpush1.bf16.msra.mxu0 0
    %647 = vmatprep.subr.bf16.mxu0 0
    %648 = vmatpush1.bf16.msra.mxu0 0
    %649 = vmatprep.subr.bf16.mxu0 0
    %650 = vmatpush1.bf16.msra.mxu0 0
    %651 = vmatprep.subr.bf16.mxu0 0
    %652 = vmatpush1.bf16.msra.mxu0 0
    %653 = vmatprep.subr.bf16.mxu0 0
    %654 = vmatpush1.bf16.msra.mxu0 0
    %655 = vmatprep.subr.bf16.mxu0 0
    %656 = vmatpush1.bf16.msra.mxu0 0
    %657 = vmatprep.subr.bf16.mxu0 0
    %658 = vmatpush1.bf16.msra.mxu0 0
    %659 = vmatprep.mubr.bf16.mxu0 0
    %660 = vmatmul.mubr.bf16.gmra.mrb[0].mxu0 %v622
    %v661 = vpop.f32.mrb[0].mxu0
    %v662 = vadd.f32 0.0, %v661
    %v663 = vpop.f32.mrb[0].mxu0
    %v664 = vpop.f32.mrb[0].mxu0
    %v665 = vpop.f32.mrb[0].mxu0
    %666 = vdwg.mxu0
    %v667 = vrcp.pop %v565
    %v668 = vrcp.pop %v568
    %v669 = vmul.f32 %v614, %v667
    %v670 = vmul.f32 %v662, %v668
    %v671 = vpack.c.bf16 %v670, %v669
    %v672 = vld [vmem:[#allocation2] sm:$0xff]
    %v673 = vld [vmem:[#allocation2 + $0x8] sm:$0xff]
    %v674 = vld [vmem:[#allocation2 + $0x10] sm:$0xff]
    %v675 = vld [vmem:[#allocation2 + $0x18] sm:$0xff]
    %s676 = scalar_lea.vmem [#allocation8], 8
    %v677 = vld [vmem:[%s676] sm:$0xff]
    %v679 = vunpack.c.l.b16 %v677
    %v680 = vunpack.c.h.b16 %v677
    %v681 = vpack.c.b16 %v679, %v679
    %v682 = vpack.c.b16 %v680, %v680
    %v684 = vsel %vm159, %v671, 0
    %v687 = vsel %vm282, %v681, 0
    %v690 = vsel %vm282, %v682, 0
    %692 = vmatprep.subr.bf16.mxu0 %v690
    %693 = vmatpush1.bf16.msra.mxu0 %v687
    %694 = vmatprep.subr.bf16.mxu0 0
    %695 = vmatpush1.bf16.msra.mxu0 0
    %696 = vmatprep.subr.bf16.mxu0 0
    %697 = vmatpush1.bf16.msra.mxu0 0
    %698 = vmatprep.subr.bf16.mxu0 0
    %699 = vmatpush1.bf16.msra.mxu0 0
    %700 = vmatprep.subr.bf16.mxu0 0
    %701 = vmatpush1.bf16.msra.mxu0 0
    %702 = vmatprep.subr.bf16.mxu0 0
    %703 = vmatpush1.bf16.msra.mxu0 0
    %704 = vmatprep.subr.bf16.mxu0 0
    %705 = vmatpush1.bf16.msra.mxu0 0
    %706 = vmatprep.subr.bf16.mxu0 0
    %707 = vmatpush1.bf16.msra.mxu0 0
    %708 = vmatprep.subr.bf16.mxu0 0
    %709 = vmatpush1.bf16.msra.mxu0 0
    %710 = vmatprep.subr.bf16.mxu0 0
    %711 = vmatpush1.bf16.msra.mxu0 0
    %712 = vmatprep.subr.bf16.mxu0 0
    %713 = vmatpush1.bf16.msra.mxu0 0
    %714 = vmatprep.subr.bf16.mxu0 0
    %715 = vmatpush1.bf16.msra.mxu0 0
    %716 = vmatprep.subr.bf16.mxu0 0
    %717 = vmatpush1.bf16.msra.mxu0 0
    %718 = vmatprep.subr.bf16.mxu0 0
    %719 = vmatpush1.bf16.msra.mxu0 0
    %720 = vmatprep.subr.bf16.mxu0 0
    %721 = vmatpush1.bf16.msra.mxu0 0
    %722 = vmatprep.subr.bf16.mxu0 0
    %723 = vmatpush1.bf16.msra.mxu0 0
    %724 = vmatprep.mubr.bf16.mxu0 0
    %725 = vmatmul.mubr.bf16.gmra.mrb[0].mxu0 %v684
    %v726 = vpop.f32.mrb[0].mxu0
    %v727 = vadd.f32 0.0, %v726
    %v728 = vpop.f32.mrb[0].mxu0
    %v729 = vadd.f32 0.0, %v728
    %v730 = vpop.f32.mrb[0].mxu0
    %v731 = vadd.f32 0.0, %v730
    %v732 = vpop.f32.mrb[0].mxu0
    %v733 = vadd.f32 0.0, %v732
    %734 = vdwg.mxu0
    %v735 = vadd.f32 %v672, %v727
    %v736 = vadd.f32 %v673, %v729
    %v737 = vadd.f32 %v674, %v731
    %v738 = vadd.f32 %v675, %v733
    %739 = vst [vmem:[#allocation2] sm:$0xff] %v735
    %740 = vst [vmem:[#allocation2 + $0x8] sm:$0xff] %v736
    %741 = vst [vmem:[#allocation2 + $0x10] sm:$0xff] %v737
    %742 = vst [vmem:[#allocation2 + $0x18] sm:$0xff] %v738
    %743 = vrot.lane.b32.xlu0 %v154, 112
    %v744 = vpop.permute.xlu0 %743
    %745 = vrot.lane.b32.xlu0 %v154, 80
    %v746 = vpop.permute.xlu0 %745
    %v748 = vsel %vm159, %v744, 0
    %v751 = vsel %vm159, %v746, 0
    %753 = vmatprep.subr.bf16.mxu0 0
    %754 = vmatpush1.bf16.xpose.msra.mxu0 %v751
    %755 = vmatprep.subr.bf16.mxu0 0
    %756 = vmatpush1.bf16.xpose.msra.mxu0 0
    %757 = vmatprep.subr.bf16.mxu0 0
    %758 = vmatpush1.bf16.xpose.msra.mxu0 0
    %759 = vmatprep.subr.bf16.mxu0 0
    %760 = vmatpush1.bf16.xpose.msra.mxu0 0
    %761 = vmatprep.subr.bf16.mxu0 0
    %762 = vmatpush1.bf16.xpose.msra.mxu0 0
    %763 = vmatprep.subr.bf16.mxu0 0
    %764 = vmatpush1.bf16.xpose.msra.mxu0 0
    %765 = vmatprep.subr.bf16.mxu0 0
    %766 = vmatpush1.bf16.xpose.msra.mxu0 0
    %767 = vmatprep.subr.bf16.mxu0 0
    %768 = vmatpush1.bf16.xpose.msra.mxu0 0
    %769 = vmatprep.subr.bf16.mxu0 0
    %770 = vmatpush1.bf16.xpose.msra.mxu0 0
    %771 = vmatprep.subr.bf16.mxu0 0
    %772 = vmatpush1.bf16.xpose.msra.mxu0 0
    %773 = vmatprep.subr.bf16.mxu0 0
    %774 = vmatpush1.bf16.xpose.msra.mxu0 0
    %775 = vmatprep.subr.bf16.mxu0 0
    %776 = vmatpush1.bf16.xpose.msra.mxu0 0
    %777 = vmatprep.subr.bf16.mxu0 0
    %778 = vmatpush1.bf16.xpose.msra.mxu0 0
    %779 = vmatprep.subr.bf16.mxu0 0
    %780 = vmatpush1.bf16.xpose.msra.mxu0 0
    %781 = vmatprep.subr.bf16.mxu0 0
    %782 = vmatpush1.bf16.xpose.msra.mxu0 0
    %783 = vmatprep.subr.bf16.mxu0 0
    %784 = vmatpush1.bf16.xpose.msra.mxu0 0
    %785 = vmatprep.mubr.bf16.mxu0 0
    %786 = vmatmul.mubr.bf16.gmra.mrb[0].mxu0 %v748
    %v787 = vpop.f32.mrb[0].mxu0
    %v788 = vadd.f32 0.0, %v787
    %v789 = vpop.f32.mrb[0].mxu0
    %v790 = vpop.f32.mrb[0].mxu0
    %v791 = vpop.f32.mrb[0].mxu0
    %792 = vdwg.mxu0
    %793 = vrot.lane.b32.xlu0 %v155, 112
    %v794 = vpop.permute.xlu0 %793
    %795 = vrot.lane.b32.xlu0 %v155, 80
    %v796 = vpop.permute.xlu0 %795
    %v798 = vsel %vm159, %v794, 0
    %v801 = vsel %vm159, %v796, 0
    %803 = vmatprep.subr.bf16.mxu0 0
    %804 = vmatpush1.bf16.xpose.msra.mxu0 %v801
    %805 = vmatprep.subr.bf16.mxu0 0
    %806 = vmatpush1.bf16.xpose.msra.mxu0 0
    %807 = vmatprep.subr.bf16.mxu0 0
    %808 = vmatpush1.bf16.xpose.msra.mxu0 0
    %809 = vmatprep.subr.bf16.mxu0 0
    %810 = vmatpush1.bf16.xpose.msra.mxu0 0
    %811 = vmatprep.subr.bf16.mxu0 0
    %812 = vmatpush1.bf16.xpose.msra.mxu0 0
    %813 = vmatprep.subr.bf16.mxu0 0
    %814 = vmatpush1.bf16.xpose.msra.mxu0 0
    %815 = vmatprep.subr.bf16.mxu0 0
    %816 = vmatpush1.bf16.xpose.msra.mxu0 0
    %817 = vmatprep.subr.bf16.mxu0 0
    %818 = vmatpush1.bf16.xpose.msra.mxu0 0
    %819 = vmatprep.subr.bf16.mxu0 0
    %820 = vmatpush1.bf16.xpose.msra.mxu0 0
    %821 = vmatprep.subr.bf16.mxu0 0
    %822 = vmatpush1.bf16.xpose.msra.mxu0 0
    %823 = vmatprep.subr.bf16.mxu0 0
    %824 = vmatpush1.bf16.xpose.msra.mxu0 0
    %825 = vmatprep.subr.bf16.mxu0 0
    %826 = vmatpush1.bf16.xpose.msra.mxu0 0
    %827 = vmatprep.subr.bf16.mxu0 0
    %828 = vmatpush1.bf16.xpose.msra.mxu0 0
    %829 = vmatprep.subr.bf16.mxu0 0
    %830 = vmatpush1.bf16.xpose.msra.mxu0 0
    %831 = vmatprep.subr.bf16.mxu0 0
    %832 = vmatpush1.bf16.xpose.msra.mxu0 0
    %833 = vmatprep.subr.bf16.mxu0 0
    %834 = vmatpush1.bf16.xpose.msra.mxu0 0
    %835 = vmatprep.mubr.bf16.mxu0 0
    %836 = vmatmul.mubr.bf16.gmra.mrb[0].mxu0 %v798
    %v837 = vpop.f32.mrb[0].mxu0
    %v838 = vadd.f32 0.0, %v837
    %v839 = vpop.f32.mrb[0].mxu0
    %v840 = vpop.f32.mrb[0].mxu0
    %v841 = vpop.f32.mrb[0].mxu0
    %842 = vdwg.mxu0
    %v843 = vmul.f32 %v788, 0.35355338
    %v844 = vmul.f32 %v838, 0.35355338
    %v845 = vsel %vm159, %v843, -inf
    %846 = vmax.xlane.f32.xlu0 %v845
    %v847 = vpop.xlane.xlu0 %846
    %v848 = vsel %vm159, %v844, -inf
    %849 = vmax.xlane.f32.xlu0 %v848
    %v850 = vpop.xlane.xlu0 %849
    %v851 = vsub.f32 %v843, %v847
    %v852 = vsub.f32 %v844, %v850
    %v853 = vmul.f32 %v851, 1.442695
    %v854 = vpow.pop %v853
    %v855 = vmul.f32 %v852, 1.442695
    %v856 = vpow.pop %v855
    %v857 = vsel %vm159, %v854, 0.0
    %858 = vadd.xlane.f32.xlu0 %v857
    %v859 = vpop.xlane.xlu0 %858
    %v860 = vsel %vm159, %v856, 0.0
    %861 = vadd.xlane.f32.xlu0 %v860
    %v862 = vpop.xlane.xlu0 %861
    %v863 = vpack.c.bf16 %v854, %v854
    %v864 = vpack.c.bf16 %v856, %v856
    %865 = vrot.lane.b32.xlu0 %v154, 48
    %v866 = vpop.permute.xlu0 %865
    %v868 = vsel %vm159, %v863, 0
    %v871 = vsel %vm282, %v866, 0
    %873 = vmatprep.subr.bf16.mxu0 0
    %874 = vmatpush1.bf16.msra.mxu0 %v871
    %875 = vmatprep.subr.bf16.mxu0 0
    %876 = vmatpush1.bf16.msra.mxu0 0
    %877 = vmatprep.subr.bf16.mxu0 0
    %878 = vmatpush1.bf16.msra.mxu0 0
    %879 = vmatprep.subr.bf16.mxu0 0
    %880 = vmatpush1.bf16.msra.mxu0 0
    %881 = vmatprep.subr.bf16.mxu0 0
    %882 = vmatpush1.bf16.msra.mxu0 0
    %883 = vmatprep.subr.bf16.mxu0 0
    %884 = vmatpush1.bf16.msra.mxu0 0
    %885 = vmatprep.subr.bf16.mxu0 0
    %886 = vmatpush1.bf16.msra.mxu0 0
    %887 = vmatprep.subr.bf16.mxu0 0
    %888 = vmatpush1.bf16.msra.mxu0 0
    %889 = vmatprep.subr.bf16.mxu0 0
    %890 = vmatpush1.bf16.msra.mxu0 0
    %891 = vmatprep.subr.bf16.mxu0 0
    %892 = vmatpush1.bf16.msra.mxu0 0
    %893 = vmatprep.subr.bf16.mxu0 0
    %894 = vmatpush1.bf16.msra.mxu0 0
    %895 = vmatprep.subr.bf16.mxu0 0
    %896 = vmatpush1.bf16.msra.mxu0 0
    %897 = vmatprep.subr.bf16.mxu0 0
    %898 = vmatpush1.bf16.msra.mxu0 0
    %899 = vmatprep.subr.bf16.mxu0 0
    %900 = vmatpush1.bf16.msra.mxu0 0
    %901 = vmatprep.subr.bf16.mxu0 0
    %902 = vmatpush1.bf16.msra.mxu0 0
    %903 = vmatprep.subr.bf16.mxu0 0
    %904 = vmatpush1.bf16.msra.mxu0 0
    %905 = vmatprep.mubr.bf16.mxu0 0
    %906 = vmatmul.mubr.bf16.gmra.mrb[0].mxu0 %v868
    %v907 = vpop.f32.mrb[0].mxu0
    %v908 = vadd.f32 0.0, %v907
    %v909 = vpop.f32.mrb[0].mxu0
    %v910 = vpop.f32.mrb[0].mxu0
    %v911 = vpop.f32.mrb[0].mxu0
    %912 = vdwg.mxu0
    %913 = vrot.lane.b32.xlu0 %v155, 48
    %v914 = vpop.permute.xlu0 %913
    %v916 = vsel %vm159, %v864, 0
    %v919 = vsel %vm282, %v914, 0
    %921 = vmatprep.subr.bf16.mxu0 0
    %922 = vmatpush1.bf16.msra.mxu0 %v919
    %923 = vmatprep.subr.bf16.mxu0 0
    %924 = vmatpush1.bf16.msra.mxu0 0
    %925 = vmatprep.subr.bf16.mxu0 0
    %926 = vmatpush1.bf16.msra.mxu0 0
    %927 = vmatprep.subr.bf16.mxu0 0
    %928 = vmatpush1.bf16.msra.mxu0 0
    %929 = vmatprep.subr.bf16.mxu0 0
    %930 = vmatpush1.bf16.msra.mxu0 0
    %931 = vmatprep.subr.bf16.mxu0 0
    %932 = vmatpush1.bf16.msra.mxu0 0
    %933 = vmatprep.subr.bf16.mxu0 0
    %934 = vmatpush1.bf16.msra.mxu0 0
    %935 = vmatprep.subr.bf16.mxu0 0
    %936 = vmatpush1.bf16.msra.mxu0 0
    %937 = vmatprep.subr.bf16.mxu0 0
    %938 = vmatpush1.bf16.msra.mxu0 0
    %939 = vmatprep.subr.bf16.mxu0 0
    %940 = vmatpush1.bf16.msra.mxu0 0
    %941 = vmatprep.subr.bf16.mxu0 0
    %942 = vmatpush1.bf16.msra.mxu0 0
    %943 = vmatprep.subr.bf16.mxu0 0
    %944 = vmatpush1.bf16.msra.mxu0 0
    %945 = vmatprep.subr.bf16.mxu0 0
    %946 = vmatpush1.bf16.msra.mxu0 0
    %947 = vmatprep.subr.bf16.mxu0 0
    %948 = vmatpush1.bf16.msra.mxu0 0
    %949 = vmatprep.subr.bf16.mxu0 0
    %950 = vmatpush1.bf16.msra.mxu0 0
    %951 = vmatprep.subr.bf16.mxu0 0
    %952 = vmatpush1.bf16.msra.mxu0 0
    %953 = vmatprep.mubr.bf16.mxu0 0
    %954 = vmatmul.mubr.bf16.gmra.mrb[0].mxu0 %v916
    %v955 = vpop.f32.mrb[0].mxu0
    %v956 = vadd.f32 0.0, %v955
    %v957 = vpop.f32.mrb[0].mxu0
    %v958 = vpop.f32.mrb[0].mxu0
    %v959 = vpop.f32.mrb[0].mxu0
    %960 = vdwg.mxu0
    %v961 = vrcp.pop %v859
    %v962 = vrcp.pop %v862
    %v963 = vmul.f32 %v908, %v961
    %v964 = vmul.f32 %v956, %v962
    %v965 = vpack.c.bf16 %v964, %v963
    %v966 = vld [vmem:[#allocation2] sm:$0xff]
    %v967 = vld [vmem:[#allocation2 + $0x8] sm:$0xff]
    %v968 = vld [vmem:[#allocation2 + $0x10] sm:$0xff]
    %v969 = vld [vmem:[#allocation2 + $0x18] sm:$0xff]
    %s970 = scalar_lea.vmem [#allocation8], 16
    %v971 = vld [vmem:[%s970] sm:$0xff]
    %v973 = vunpack.c.l.b16 %v971
    %v974 = vunpack.c.h.b16 %v971
    %v975 = vpack.c.b16 %v973, %v973
    %v976 = vpack.c.b16 %v974, %v974
    %v978 = vsel %vm159, %v965, 0
    %v981 = vsel %vm282, %v975, 0
    %v984 = vsel %vm282, %v976, 0
    %986 = vmatprep.subr.bf16.mxu0 %v984
    %987 = vmatpush1.bf16.msra.mxu0 %v981
    %988 = vmatprep.subr.bf16.mxu0 0
    %989 = vmatpush1.bf16.msra.mxu0 0
    %990 = vmatprep.subr.bf16.mxu0 0
    %991 = vmatpush1.bf16.msra.mxu0 0
    %992 = vmatprep.subr.bf16.mxu0 0
    %993 = vmatpush1.bf16.msra.mxu0 0
    %994 = vmatprep.subr.bf16.mxu0 0
    %995 = vmatpush1.bf16.msra.mxu0 0
    %996 = vmatprep.subr.bf16.mxu0 0
    %997 = vmatpush1.bf16.msra.mxu0 0
    %998 = vmatprep.subr.bf16.mxu0 0
    %999 = vmatpush1.bf16.msra.mxu0 0
    %1000 = vmatprep.subr.bf16.mxu0 0
    %1001 = vmatpush1.bf16.msra.mxu0 0
    %1002 = vmatprep.subr.bf16.mxu0 0
    %1003 = vmatpush1.bf16.msra.mxu0 0
    %1004 = vmatprep.subr.bf16.mxu0 0
    %1005 = vmatpush1.bf16.msra.mxu0 0
    %1006 = vmatprep.subr.bf16.mxu0 0
    %1007 = vmatpush1.bf16.msra.mxu0 0
    %1008 = vmatprep.subr.bf16.mxu0 0
    %1009 = vmatpush1.bf16.msra.mxu0 0
    %1010 = vmatprep.subr.bf16.mxu0 0
    %1011 = vmatpush1.bf16.msra.mxu0 0
    %1012 = vmatprep.subr.bf16.mxu0 0
    %1013 = vmatpush1.bf16.msra.mxu0 0
    %1014 = vmatprep.subr.bf16.mxu0 0
    %1015 = vmatpush1.bf16.msra.mxu0 0
    %1016 = vmatprep.subr.bf16.mxu0 0
    %1017 = vmatpush1.bf16.msra.mxu0 0
    %1018 = vmatprep.mubr.bf16.mxu0 0
    %1019 = vmatmul.mubr.bf16.gmra.mrb[0].mxu0 %v978
    %v1020 = vpop.f32.mrb[0].mxu0
    %v1021 = vadd.f32 0.0, %v1020
    %v1022 = vpop.f32.mrb[0].mxu0
    %v1023 = vadd.f32 0.0, %v1022
    %v1024 = vpop.f32.mrb[0].mxu0
    %v1025 = vadd.f32 0.0, %v1024
    %v1026 = vpop.f32.mrb[0].mxu0
    %v1027 = vadd.f32 0.0, %v1026
    %1028 = vdwg.mxu0
    %v1029 = vadd.f32 %v966, %v1021
    %v1030 = vadd.f32 %v967, %v1023
    %v1031 = vadd.f32 %v968, %v1025
    %v1032 = vadd.f32 %v969, %v1027
    %1033 = vst [vmem:[#allocation2] sm:$0xff] %v1029
    %1034 = vst [vmem:[#allocation2 + $0x8] sm:$0xff] %v1030
    %1035 = vst [vmem:[#allocation2 + $0x10] sm:$0xff] %v1031
    %1036 = vst [vmem:[#allocation2 + $0x18] sm:$0xff] %v1032
    %1037 = vrot.lane.b32.xlu0 %v154, 104
    %v1038 = vpop.permute.xlu0 %1037
    %1039 = vrot.lane.b32.xlu0 %v154, 72
    %v1040 = vpop.permute.xlu0 %1039
    %v1042 = vsel %vm159, %v1038, 0
    %v1045 = vsel %vm159, %v1040, 0
    %1047 = vmatprep.subr.bf16.mxu0 0
    %1048 = vmatpush1.bf16.xpose.msra.mxu0 %v1045
    %1049 = vmatprep.subr.bf16.mxu0 0
    %1050 = vmatpush1.bf16.xpose.msra.mxu0 0
    %1051 = vmatprep.subr.bf16.mxu0 0
    %1052 = vmatpush1.bf16.xpose.msra.mxu0 0
    %1053 = vmatprep.subr.bf16.mxu0 0
    %1054 = vmatpush1.bf16.xpose.msra.mxu0 0
    %1055 = vmatprep.subr.bf16.mxu0 0
    %1056 = vmatpush1.bf16.xpose.msra.mxu0 0
    %1057 = vmatprep.subr.bf16.mxu0 0
    %1058 = vmatpush1.bf16.xpose.msra.mxu0 0
    %1059 = vmatprep.subr.bf16.mxu0 0
    %1060 = vmatpush1.bf16.xpose.msra.mxu0 0
    %1061 = vmatprep.subr.bf16.mxu0 0
    %1062 = vmatpush1.bf16.xpose.msra.mxu0 0
    %1063 = vmatprep.subr.bf16.mxu0 0
    %1064 = vmatpush1.bf16.xpose.msra.mxu0 0
    %1065 = vmatprep.subr.bf16.mxu0 0
    %1066 = vmatpush1.bf16.xpose.msra.mxu0 0
    %1067 = vmatprep.subr.bf16.mxu0 0
    %1068 = vmatpush1.bf16.xpose.msra.mxu0 0
    %1069 = vmatprep.subr.bf16.mxu0 0
    %1070 = vmatpush1.bf16.xpose.msra.mxu0 0
    %1071 = vmatprep.subr.bf16.mxu0 0
    %1072 = vmatpush1.bf16.xpose.msra.mxu0 0
    %1073 = vmatprep.subr.bf16.mxu0 0
    %1074 = vmatpush1.bf16.xpose.msra.mxu0 0
    %1075 = vmatprep.subr.bf16.mxu0 0
    %1076 = vmatpush1.bf16.xpose.msra.mxu0 0
    %1077 = vmatprep.subr.bf16.mxu0 0
    %1078 = vmatpush1.bf16.xpose.msra.mxu0 0
    %1079 = vmatprep.mubr.bf16.mxu0 0
    %1080 = vmatmul.mubr.bf16.gmra.mrb[0].mxu0 %v1042
    %v1081 = vpop.f32.mrb[0].mxu0
    %v1082 = vadd.f32 0.0, %v1081
    %v1083 = vpop.f32.mrb[0].mxu0
    %v1084 = vpop.f32.mrb[0].mxu0
    %v1085 = vpop.f32.mrb[0].mxu0
    %1086 = vdwg.mxu0
    %1087 = vrot.lane.b32.xlu0 %v155, 104
    %v1088 = vpop.permute.xlu0 %1087
    %1089 = vrot.lane.b32.xlu0 %v155, 72
    %v1090 = vpop.permute.xlu0 %1089
    %v1092 = vsel %vm159, %v1088, 0
    %v1095 = vsel %vm159, %v1090, 0
    %1097 = vmatprep.subr.bf16.mxu0 0
    %1098 = vmatpush1.bf16.xpose.msra.mxu0 %v1095
    %1099 = vmatprep.subr.bf16.mxu0 0
    %1100 = vmatpush1.bf16.xpose.msra.mxu0 0
    %1101 = vmatprep.subr.bf16.mxu0 0
    %1102 = vmatpush1.bf16.xpose.msra.mxu0 0
    %1103 = vmatprep.subr.bf16.mxu0 0
    %1104 = vmatpush1.bf16.xpose.msra.mxu0 0
    %1105 = vmatprep.subr.bf16.mxu0 0
    %1106 = vmatpush1.bf16.xpose.msra.mxu0 0
    %1107 = vmatprep.subr.bf16.mxu0 0
    %1108 = vmatpush1.bf16.xpose.msra.mxu0 0
    %1109 = vmatprep.subr.bf16.mxu0 0
    %1110 = vmatpush1.bf16.xpose.msra.mxu0 0
    %1111 = vmatprep.subr.bf16.mxu0 0
    %1112 = vmatpush1.bf16.xpose.msra.mxu0 0
    %1113 = vmatprep.subr.bf16.mxu0 0
    %1114 = vmatpush1.bf16.xpose.msra.mxu0 0
    %1115 = vmatprep.subr.bf16.mxu0 0
    %1116 = vmatpush1.bf16.xpose.msra.mxu0 0
    %1117 = vmatprep.subr.bf16.mxu0 0
    %1118 = vmatpush1.bf16.xpose.msra.mxu0 0
    %1119 = vmatprep.subr.bf16.mxu0 0
    %1120 = vmatpush1.bf16.xpose.msra.mxu0 0
    %1121 = vmatprep.subr.bf16.mxu0 0
    %1122 = vmatpush1.bf16.xpose.msra.mxu0 0
    %1123 = vmatprep.subr.bf16.mxu0 0
    %1124 = vmatpush1.bf16.xpose.msra.mxu0 0
    %1125 = vmatprep.subr.bf16.mxu0 0
    %1126 = vmatpush1.bf16.xpose.msra.mxu0 0
    %1127 = vmatprep.subr.bf16.mxu0 0
    %1128 = vmatpush1.bf16.xpose.msra.mxu0 0
    %1129 = vmatprep.mubr.bf16.mxu0 0
    %1130 = vmatmul.mubr.bf16.gmra.mrb[0].mxu0 %v1092
    %v1131 = vpop.f32.mrb[0].mxu0
    %v1132 = vadd.f32 0.0, %v1131
    %v1133 = vpop.f32.mrb[0].mxu0
    %v1134 = vpop.f32.mrb[0].mxu0
    %v1135 = vpop.f32.mrb[0].mxu0
    %1136 = vdwg.mxu0
    %v1137 = vmul.f32 %v1082, 0.35355338
    %v1138 = vmul.f32 %v1132, 0.35355338
    %v1139 = vsel %vm159, %v1137, -inf
    %1140 = vmax.xlane.f32.xlu0 %v1139
    %v1141 = vpop.xlane.xlu0 %1140
    %v1142 = vsel %vm159, %v1138, -inf
    %1143 = vmax.xlane.f32.xlu0 %v1142
    %v1144 = vpop.xlane.xlu0 %1143
    %v1145 = vsub.f32 %v1137, %v1141
    %v1146 = vsub.f32 %v1138, %v1144
    %v1147 = vmul.f32 %v1145, 1.442695
    %v1148 = vpow.pop %v1147
    %v1149 = vmul.f32 %v1146, 1.442695
    %v1150 = vpow.pop %v1149
    %v1151 = vsel %vm159, %v1148, 0.0
    %1152 = vadd.xlane.f32.xlu0 %v1151
    %v1153 = vpop.xlane.xlu0 %1152
    %v1154 = vsel %vm159, %v1150, 0.0
    %1155 = vadd.xlane.f32.xlu0 %v1154
    %v1156 = vpop.xlane.xlu0 %1155
    %v1157 = vpack.c.bf16 %v1148, %v1148
    %v1158 = vpack.c.bf16 %v1150, %v1150
    %1159 = vrot.lane.b32.xlu0 %v154, 40
    %v1160 = vpop.permute.xlu0 %1159
    %v1162 = vsel %vm159, %v1157, 0
    %v1165 = vsel %vm282, %v1160, 0
    %1167 = vmatprep.subr.bf16.mxu0 0
    %1168 = vmatpush1.bf16.msra.mxu0 %v1165
    %1169 = vmatprep.subr.bf16.mxu0 0
    %1170 = vmatpush1.bf16.msra.mxu0 0
    %1171 = vmatprep.subr.bf16.mxu0 0
    %1172 = vmatpush1.bf16.msra.mxu0 0
    %1173 = vmatprep.subr.bf16.mxu0 0
    %1174 = vmatpush1.bf16.msra.mxu0 0
    %1175 = vmatprep.subr.bf16.mxu0 0
    %1176 = vmatpush1.bf16.msra.mxu0 0
    %1177 = vmatprep.subr.bf16.mxu0 0
    %1178 = vmatpush1.bf16.msra.mxu0 0
    %1179 = vmatprep.subr.bf16.mxu0 0
    %1180 = vmatpush1.bf16.msra.mxu0 0
    %1181 = vmatprep.subr.bf16.mxu0 0
    %1182 = vmatpush1.bf16.msra.mxu0 0
    %1183 = vmatprep.subr.bf16.mxu0 0
    %1184 = vmatpush1.bf16.msra.mxu0 0
    %1185 = vmatprep.subr.bf16.mxu0 0
    %1186 = vmatpush1.bf16.msra.mxu0 0
    %1187 = vmatprep.subr.bf16.mxu0 0
    %1188 = vmatpush1.bf16.msra.mxu0 0
    %1189 = vmatprep.subr.bf16.mxu0 0
    %1190 = vmatpush1.bf16.msra.mxu0 0
    %1191 = vmatprep.subr.bf16.mxu0 0
    %1192 = vmatpush1.bf16.msra.mxu0 0
    %1193 = vmatprep.subr.bf16.mxu0 0
    %1194 = vmatpush1.bf16.msra.mxu0 0
    %1195 = vmatprep.subr.bf16.mxu0 0
    %1196 = vmatpush1.bf16.msra.mxu0 0
    %1197 = vmatprep.subr.bf16.mxu0 0
    %1198 = vmatpush1.bf16.msra.mxu0 0
    %1199 = vmatprep.mubr.bf16.mxu0 0
    %1200 = vmatmul.mubr.bf16.gmra.mrb[0].mxu0 %v1162
    %v1201 = vpop.f32.mrb[0].mxu0
    %v1202 = vadd.f32 0.0, %v1201
    %v1203 = vpop.f32.mrb[0].mxu0
    %v1204 = vpop.f32.mrb[0].mxu0
    %v1205 = vpop.f32.mrb[0].mxu0
    %1206 = vdwg.mxu0
    %1207 = vrot.lane.b32.xlu0 %v155, 40
    %v1208 = vpop.permute.xlu0 %1207
    %v1210 = vsel %vm159, %v1158, 0
    %v1213 = vsel %vm282, %v1208, 0
    %1215 = vmatprep.subr.bf16.mxu0 0
    %1216 = vmatpush1.bf16.msra.mxu0 %v1213
    %1217 = vmatprep.subr.bf16.mxu0 0
    %1218 = vmatpush1.bf16.msra.mxu0 0
    %1219 = vmatprep.subr.bf16.mxu0 0
    %1220 = vmatpush1.bf16.msra.mxu0 0
    %1221 = vmatprep.subr.bf16.mxu0 0
    %1222 = vmatpush1.bf16.msra.mxu0 0
    %1223 = vmatprep.subr.bf16.mxu0 0
    %1224 = vmatpush1.bf16.msra.mxu0 0
    %1225 = vmatprep.subr.bf16.mxu0 0
    %1226 = vmatpush1.bf16.msra.mxu0 0
    %1227 = vmatprep.subr.bf16.mxu0 0
    %1228 = vmatpush1.bf16.msra.mxu0 0
    %1229 = vmatprep.subr.bf16.mxu0 0
    %1230 = vmatpush1.bf16.msra.mxu0 0
    %1231 = vmatprep.subr.bf16.mxu0 0
    %1232 = vmatpush1.bf16.msra.mxu0 0
    %1233 = vmatprep.subr.bf16.mxu0 0
    %1234 = vmatpush1.bf16.msra.mxu0 0
    %1235 = vmatprep.subr.bf16.mxu0 0
    %1236 = vmatpush1.bf16.msra.mxu0 0
    %1237 = vmatprep.subr.bf16.mxu0 0
    %1238 = vmatpush1.bf16.msra.mxu0 0
    %1239 = vmatprep.subr.bf16.mxu0 0
    %1240 = vmatpush1.bf16.msra.mxu0 0
    %1241 = vmatprep.subr.bf16.mxu0 0
    %1242 = vmatpush1.bf16.msra.mxu0 0
    %1243 = vmatprep.subr.bf16.mxu0 0
    %1244 = vmatpush1.bf16.msra.mxu0 0
    %1245 = vmatprep.subr.bf16.mxu0 0
    %1246 = vmatpush1.bf16.msra.mxu0 0
    %1247 = vmatprep.mubr.bf16.mxu0 0
    %1248 = vmatmul.mubr.bf16.gmra.mrb[0].mxu0 %v1210
    %v1249 = vpop.f32.mrb[0].mxu0
    %v1250 = vadd.f32 0.0, %v1249
    %v1251 = vpop.f32.mrb[0].mxu0
    %v1252 = vpop.f32.mrb[0].mxu0
    %v1253 = vpop.f32.mrb[0].mxu0
    %1254 = vdwg.mxu0
    %v1255 = vrcp.pop %v1153
    %v1256 = vrcp.pop %v1156
    %v1257 = vmul.f32 %v1202, %v1255
    %v1258 = vmul.f32 %v1250, %v1256
    %v1259 = vpack.c.bf16 %v1258, %v1257
    %v1260 = vld [vmem:[#allocation2] sm:$0xff]
    %v1261 = vld [vmem:[#allocation2 + $0x8] sm:$0xff]
    %v1262 = vld [vmem:[#allocation2 + $0x10] sm:$0xff]
    %v1263 = vld [vmem:[#allocation2 + $0x18] sm:$0xff]
    %s1264 = scalar_lea.vmem [#allocation8], 24
    %v1265 = vld [vmem:[%s1264] sm:$0xff]
    %v1267 = vunpack.c.l.b16 %v1265
    %v1268 = vunpack.c.h.b16 %v1265
    %v1269 = vpack.c.b16 %v1267, %v1267
    %v1270 = vpack.c.b16 %v1268, %v1268
    %v1272 = vsel %vm159, %v1259, 0
    %v1275 = vsel %vm282, %v1269, 0
    %v1278 = vsel %vm282, %v1270, 0
    %1280 = vmatprep.subr.bf16.mxu0 %v1278
    %1281 = vmatpush1.bf16.msra.mxu0 %v1275
    %1282 = vmatprep.subr.bf16.mxu0 0
    %1283 = vmatpush1.bf16.msra.mxu0 0
    %1284 = vmatprep.subr.bf16.mxu0 0
    %1285 = vmatpush1.bf16.msra.mxu0 0
    %1286 = vmatprep.subr.bf16.mxu0 0
    %1287 = vmatpush1.bf16.msra.mxu0 0
    %1288 = vmatprep.subr.bf16.mxu0 0
    %1289 = vmatpush1.bf16.msra.mxu0 0
    %1290 = vmatprep.subr.bf16.mxu0 0
    %1291 = vmatpush1.bf16.msra.mxu0 0
    %1292 = vmatprep.subr.bf16.mxu0 0
    %1293 = vmatpush1.bf16.msra.mxu0 0
    %1294 = vmatprep.subr.bf16.mxu0 0
    %1295 = vmatpush1.bf16.msra.mxu0 0
    %1296 = vmatprep.subr.bf16.mxu0 0
    %1297 = vmatpush1.bf16.msra.mxu0 0
    %1298 = vmatprep.subr.bf16.mxu0 0
    %1299 = vmatpush1.bf16.msra.mxu0 0
    %1300 = vmatprep.subr.bf16.mxu0 0
    %1301 = vmatpush1.bf16.msra.mxu0 0
    %1302 = vmatprep.subr.bf16.mxu0 0
    %1303 = vmatpush1.bf16.msra.mxu0 0
    %1304 = vmatprep.subr.bf16.mxu0 0
    %1305 = vmatpush1.bf16.msra.mxu0 0
    %1306 = vmatprep.subr.bf16.mxu0 0
    %1307 = vmatpush1.bf16.msra.mxu0 0
    %1308 = vmatprep.subr.bf16.mxu0 0
    %1309 = vmatpush1.bf16.msra.mxu0 0
    %1310 = vmatprep.subr.bf16.mxu0 0
    %1311 = vmatpush1.bf16.msra.mxu0 0
    %1312 = vmatprep.mubr.bf16.mxu0 0
    %1313 = vmatmul.mubr.bf16.gmra.mrb[0].mxu0 %v1272
    %v1314 = vpop.f32.mrb[0].mxu0
    %v1315 = vadd.f32 0.0, %v1314
    %v1316 = vpop.f32.mrb[0].mxu0
    %v1317 = vadd.f32 0.0, %v1316
    %v1318 = vpop.f32.mrb[0].mxu0
    %v1319 = vadd.f32 0.0, %v1318
    %v1320 = vpop.f32.mrb[0].mxu0
    %v1321 = vadd.f32 0.0, %v1320
    %1322 = vdwg.mxu0
    %v1323 = vadd.f32 %v1260, %v1315
    %v1324 = vadd.f32 %v1261, %v1317
    %v1325 = vadd.f32 %v1262, %v1319
    %v1326 = vadd.f32 %v1263, %v1321
    %1327 = vst [vmem:[#allocation2] sm:$0xff] %v1323
    %1328 = vst [vmem:[#allocation2 + $0x8] sm:$0xff] %v1324
    %1329 = vst [vmem:[#allocation2 + $0x10] sm:$0xff] %v1325
    %1330 = vst [vmem:[#allocation2 + $0x18] sm:$0xff] %v1326
    %v1331 = vld [vmem:[#allocation2] sm:$0xff]
    %v1332 = vld [vmem:[#allocation2 + $0x8] sm:$0xff]
    %v1333 = vld [vmem:[#allocation2 + $0x10] sm:$0xff]
    %v1334 = vld [vmem:[#allocation2 + $0x18] sm:$0xff]
    %1335 = vst [vmem:[#allocation9] sm:$0xff] %v1331
    %1336 = vst [vmem:[#allocation9 + $0x8] sm:$0xff] %v1332
    %1337 = vst [vmem:[#allocation9 + $0x10] sm:$0xff] %v1333
    %1338 = vst [vmem:[#allocation9 + $0x18] sm:$0xff] %v1334
    // Predicated region
    $region34: #{tpu_custom_call.1} parent=1 // pred_check
      _
    $region35: #{tpu_custom_call.1} parent=1 // pred_check_branch
      %1340 = sbr.rel (0) target = $region37
    $region36: #{tpu_custom_call.1} parent=1 // pred_region
      %s1342 = ssub.s32 512, 512
      %1343 = vsyncadd [#allocation5], %s1342
      %s1344 = sshll.u32 [#allocation9], 4
      %s1345 = int_to_ptr.vmem [resolvable:$true] %s1344
      %1350 = dma.vmem_to_hbm [thread:$0]  %s1345, 512, %s5, [#allocation5], 256, 256, 16
    $region37: #{tpu_custom_call.1} parent=1 // pred_fallthru
      _
    // Predicated region
    $region38: #{tpu_custom_call.1} parent=1 // pred_check
      _
    $region39: #{tpu_custom_call.1} parent=1 // pred_check_branch
      %1352 = sbr.rel (0) target = $region41
    $region40: #{tpu_custom_call.1} parent=1 // pred_region
      %1353 = dma.done [#allocation5], 512
    $region41: #{tpu_custom_call.1} parent=1 // pred_fallthru
      _
    %1354 = vsyncpa [#allocation4], 1
    %1355 = vsyncpa [#allocation7], 1
    %1356 = vsyncpa [#allocation5], 1

</llo_original>
